<compile_context>
chip_gen: v7x
topology: tpu7x:2x2x1
jax: 0.10.0
libtpu: 0.0.40
codegen_flags: <defaults>
</compile_context>

<pallas_src>
import math
import functools

import jax
import jax.numpy as jnp
from jax import lax
from jax.experimental import pallas as pl
from jax.experimental.pallas import tpu as pltpu


# Set to jnp.bfloat16 in production for ~2x MXU throughput and half the
# VMEM/HBM traffic on v5e/v6e/v7x (f32 accumulation is kept via
# preferred_element_type; softmax/LayerNorm math stays f32 either way).
# Left at f32 here so the demo check matches the f32 PyTorch reference at 5e-3.
MATMUL_DTYPE = jnp.float32
LN_EPS = 1e-12


def _dot(a, b):
    return jnp.dot(a.astype(MATMUL_DTYPE), b.astype(MATMUL_DTYPE),
                   preferred_element_type=jnp.float32)


def _dotg(a, b, dims):
    return lax.dot_general(a.astype(MATMUL_DTYPE), b.astype(MATMUL_DTYPE),
                           dimension_numbers=dims,
                           preferred_element_type=jnp.float32)


@functools.lru_cache(maxsize=None)
def _tpu_defaults():
    """(vmem_limit_bytes, row_tile) tuned per TPU generation."""
    vmem_bytes = 128 * 1024 * 1024
    try:
        vmem_bytes = int(pltpu.get_tpu_info().vmem_capacity_bytes)
    except Exception:
        pass
    if vmem_bytes <= 64 * 1024 * 1024:          # v7x-class: 64 MiB physical VMEM
        return 44 * 1024 * 1024, 256
    return 100 * 1024 * 1024, 512               # v5e / v6e: 128 MiB physical VMEM


def _cparams(vmem_limit, *semantics):
    return pltpu.CompilerParams(dimension_semantics=semantics,
                                vmem_limit_bytes=vmem_limit)


def _row_plan(m, row_tile):
    """Row-tile size + padded row count (pad instead of a silent full-M fallback)."""
    if m <= row_tile:
        return m, m
    padded = ((m + row_tile - 1) // row_tile) * row_tile
    return row_tile, padded


def _hidden_tile(h):
    if h <= 512:
        return h
    for t in (512, 256, 128):
        if h % t == 0:
            return t
    return h  # TODO(synk): pad ragged hidden dims instead of full residency.


# ----------------------------------------------------------------------------
# Kernel 1: fused {QKV proj + multi-head attention + out proj + add + LayerNorm}
# ----------------------------------------------------------------------------

def _mha_proj_ln_kernel(*refs, n_head, fuse_qkv):
    if fuse_qkv:  # self-attention with a single q tile: one [S,D]x[D,3D] matmul
        (xq_ref, wqkv_ref, bqkv_ref, mask_ref,
         wo_ref, bo_ref, g_ref, bt_ref, o_ref) = refs
        xkv_ref = xq_ref
    else:
        (xq_ref, xkv_ref, wqkv_ref, bqkv_ref, mask_ref,
         wo_ref, bo_ref, g_ref, bt_ref, o_ref) = refs

    tq, D = xq_ref.shape[1], xq_ref.shape[2]
    Sk = xkv_ref.shape[1]
    dh = D // n_head
    scale = 1.0 / math.sqrt(dh)

    xq = xq_ref[0]                       # [tq, D]
    w = wqkv_ref[...]                    # [D, 3D]  (Wq | Wk | Wv)
    b = bqkv_ref[...]                    # [1, 3D]

    # TODO(synk): for very large D, stream wqkv/wo over a K grid axis with a
    # VMEM accumulator instead of keeping the full weights resident.
    if fuse_qkv:
        qkv = _dot(xq, w) + b                            # [tq, 3D]
        q, k, v = qkv[:, :D], qkv[:, D:2 * D], qkv[:, 2 * D:]
    else:
        xkv = xkv_ref[0]                                 # [Sk, D]
        q = _dot(xq, w[:, :D]) + b[:, :D]                # [tq, D]
        kv = _dot(xkv, w[:, D:]) + b[:, D:]              # [Sk, 2D]
        k, v = kv[:, :D], kv[:, D:]

    # [S, D] -> [n_head, S, dh]: one batched layout, no per-head unrolled loop.
    qh = jnp.swapaxes(q.reshape(tq, n_head, dh), 0, 1)   # [H, tq, dh]
    kh = jnp.swapaxes(k.reshape(Sk, n_head, dh), 0, 1)   # [H, Sk, dh]
    vh = jnp.swapaxes(v.reshape(Sk, n_head, dh), 0, 1)   # [H, Sk, dh]

    # TODO(synk): for long sequences switch to flash-style online softmax with
    # an Sk grid axis so the [H, tq, Sk] score tile stays bounded (v7x 64 MiB).
    s = _dotg(qh, kh, (((2,), (2,)), ((0,), (0,)))) * scale        # [H, tq, Sk]
    keep = mask_ref[0] != 0                                        # [tq, Sk] (int8 in)
    s = jnp.where(keep[None, :, :], s, -10000.0)                   # masked_fill(mask==0)
    s = s - jnp.max(s, axis=-1, keepdims=True)
    p = jnp.exp(s)
    p = p * pl.reciprocal(jnp.sum(p, axis=-1, keepdims=True), approx=True)

    ctx = _dotg(p, vh, (((2,), (1,)), ((0,), (0,))))               # [H, tq, dh]
    ctx = jnp.swapaxes(ctx, 0, 1).reshape(tq, D)                   # lane-dense [tq, D]

    # Output projection + residual (query input) + LayerNorm, fused epilogue.
    y = _dot(ctx, wo_ref[...]) + bo_ref[...] + xq.astype(jnp.float32)
    mean = jnp.mean(y, axis=-1, keepdims=True)
    var = jnp.mean((y - mean) ** 2, axis=-1, keepdims=True)
    yn = (y - mean) * lax.rsqrt(var + LN_EPS)
    o_ref[0] = (yn * g_ref[...] + bt_ref[...]).astype(o_ref.dtype)


def mha_proj_ln_block(x_q, x_kv, mask, wqkv, bqkv, wo, bo, gamma, beta,
                      n_head, *, is_self):
    """Fused attention block: LayerNorm(out_proj(MHA(x_q, x_kv)) + x_q)."""
    B, Sq, D = x_q.shape
    Sk = x_kv.shape[1]
    vmem_limit, row_tile = _tpu_defaults()

    tq, Sq_pad = _row_plan(Sq, row_tile)
    if Sq_pad != Sq:
        x_q = jnp.pad(x_q, ((0, 0), (0, Sq_pad - Sq), (0, 0)))
        mask = jnp.pad(mask, ((0, 0), (0, Sq_pad - Sq), (0, 0)))
    nq = Sq_pad // tq
    fuse_qkv = is_self and nq == 1

    mask_i8 = (mask != 0).astype(jnp.int8)      # 4x less HBM traffic than f32
    bqkv2 = bqkv.reshape(1, 3 * D)
    bo2, g2, bt2 = bo.reshape(1, D), gamma.reshape(1, D), beta.reshape(1, D)

    xq_spec = pl.BlockSpec((1, tq, D), lambda b, i: (b, i, 0))
    common_specs = [
        pl.BlockSpec((D, 3 * D), lambda b, i: (0, 0)),         # wqkv
        pl.BlockSpec((1, 3 * D), lambda b, i: (0, 0)),         # bqkv
        pl.BlockSpec((1, tq, Sk), lambda b, i: (b, i, 0)),     # mask (int8)
        pl.BlockSpec((D, D), lambda b, i: (0, 0)),             # wo
        pl.BlockSpec((1, D), lambda b, i: (0, 0)),             # bo
        pl.BlockSpec((1, D), lambda b, i: (0, 0)),             # gamma
        pl.BlockSpec((1, D), lambda b, i: (0, 0)),             # beta
    ]
    if fuse_qkv:
        in_specs = [xq_spec] + common_specs
        args = (x_q, wqkv, bqkv2, mask_i8, wo, bo2, g2, bt2)
    else:
        xkv_spec = pl.BlockSpec((1, Sk, D), lambda b, i: (b, 0, 0))
        in_specs = [xq_spec, xkv_spec] + common_specs
        args = (x_q, x_kv, wqkv, bqkv2, mask_i8, wo, bo2, g2, bt2)

    kernel = functools.partial(_mha_proj_ln_kernel, n_head=n_head,
                               fuse_qkv=fuse_qkv)
    out = pl.pallas_call(
        kernel,
        out_shape=jax.ShapeDtypeStruct((B, Sq_pad, D), jnp.float32),
        grid=(B, nq),
        in_specs=in_specs,
        out_specs=pl.BlockSpec((1, tq, D), lambda b, i: (b, i, 0)),
        compiler_params=_cparams(vmem_limit, "parallel", "parallel"),
    )(*args)
    return out[:, :Sq] if Sq_pad != Sq else out


# ----------------------------------------------------------------------------
# Kernel 2: FFN (linear -> ReLU -> linear) + residual add + LayerNorm, H-tiled
# ----------------------------------------------------------------------------

def _ffn_add_ln_kernel(x_ref, w1_ref, b1_ref, w2_ref, b2_ref, g_ref, bt_ref,
                       o_ref, acc_ref):
    h = pl.program_id(1)

    @pl.when(h == 0)
    def _():
        acc_ref[...] = jnp.zeros_like(acc_ref)

    x = x_ref[...]
    hid = jnp.maximum(_dot(x, w1_ref[...]) + b1_ref[...], 0.0)   # [tm, tH]
    acc_ref[...] += _dot(hid, w2_ref[...])                       # [tm, D]

    @pl.when(h == pl.num_programs(1) - 1)
    def _():
        y = acc_ref[...] + b2_ref[...] + x                       # residual = FFN input
        mean = jnp.mean(y, axis=-1, keepdims=True)
        var = jnp.mean((y - mean) ** 2, axis=-1, keepdims=True)
        yn = (y - mean) * lax.rsqrt(var + LN_EPS)
        o_ref[...] = (yn * g_ref[...] + bt_ref[...]).astype(o_ref.dtype)


def ffn_add_layernorm(x, w1, b1, w2, b2, gamma, beta):
    M, D = x.shape
    H = w1.shape[1]
    vmem_limit, row_tile = _tpu_defaults()

    tm, M_pad = _row_plan(M, row_tile)
    if M_pad != M:
        x = jnp.pad(x, ((0, M_pad - M), (0, 0)))
    tH = _hidden_tile(H)

    out = pl.pallas_call(
        _ffn_add_ln_kernel,
        out_shape=jax.ShapeDtypeStruct((M_pad, D), jnp.float32),
        grid=(M_pad // tm, H // tH),
        in_specs=[
            pl.BlockSpec((tm, D), lambda i, h: (i, 0)),   # x (fetched once per i)
            pl.BlockSpec((D, tH), lambda i, h: (0, h)),   # w1 tile
            pl.BlockSpec((1, tH), lambda i, h: (0, h)),   # b1 tile
            pl.BlockSpec((tH, D), lambda i, h: (h, 0)),   # w2 tile
            pl.BlockSpec((1, D), lambda i, h: (0, 0)),    # b2
            pl.BlockSpec((1, D), lambda i, h: (0, 0)),    # gamma
            pl.BlockSpec((1, D), lambda i, h: (0, 0)),    # beta
        ],
        out_specs=pl.BlockSpec((tm, D), lambda i, h: (i, 0)),
        scratch_shapes=[pltpu.VMEM((tm, D), jnp.float32)],
        compiler_params=_cparams(vmem_limit, "parallel", "arbitrary"),
    )(x, w1, b1.reshape(1, H), w2, b2.reshape(1, D),
      gamma.reshape(1, D), beta.reshape(1, D))
    return out[:M] if M_pad != M else out


# ----------------------------------------------------------------------------
# DecoderLayer forward (dropout = identity)
# ----------------------------------------------------------------------------

def decoder_layer(dec, enc, t_mask, s_mask, p, n_head):
    B, S, D = dec.shape

    # self attention -> out proj -> add & norm (one fused pallas_call)
    x = mha_proj_ln_block(dec, dec, t_mask, p["attn1_wqkv"], p["attn1_bqkv"],
                          p["attn1_wo"], p["attn1_bo"], p["ln1_g"], p["ln1_b"],
                          n_head, is_self=True)

    # cross attention -> out proj -> add & norm (one fused pallas_call)
    if enc is not None:
        x = mha_proj_ln_block(x, enc, s_mask, p["attn2_wqkv"], p["attn2_bqkv"],
                              p["attn2_wo"], p["attn2_bo"], p["ln2_g"], p["ln2_b"],
                              n_head, is_self=False)

    # feed-forward -> add & norm (one fused pallas_call, hidden dim tiled)
    x = ffn_add_layernorm(x.reshape(B * S, D),
                          p["ffn_w1"], p["ffn_b1"], p["ffn_w2"], p["ffn_b2"],
                          p["ln3_g"], p["ln3_b"]).reshape(B, S, D)
    return x


# ----------------------------------------------------------------------------
# Pure-JAX reference (for in-script correctness check)
# ----------------------------------------------------------------------------

def reference_decoder_layer(dec, enc, t_mask, s_mask, p, n_head):
    def mha(xq, xkv, mask, wqkv, bqkv, wo, bo):
        B, Sq, D = xq.shape
        Sk = xkv.shape[1]
        dh = D // n_head
        q = xq @ wqkv[:, :D] + bqkv[:D]
        k = xkv @ wqkv[:, D:2 * D] + bqkv[D:2 * D]
        v = xkv @ wqkv[:, 2 * D:] + bqkv[2 * D:]
        split = lambda t, S: t.reshape(B, S, n_head, dh).transpose(0, 2, 1, 3)
        q, k, v = split(q, Sq), split(k, Sk), split(v, Sk)
        s = jnp.einsum("bhqd,bhkd->bhqk", q, k) / math.sqrt(dh)
        s = jnp.where(mask[:, None] == 0, -10000.0, s)
        a = jax.nn.softmax(s, axis=-1)
        ctx = jnp.einsum("bhqk,bhkd->bhqd", a, v)
        ctx = ctx.transpose(0, 2, 1, 3).reshape(B, Sq, D)
        return ctx @ wo + bo

    def ln(x, g, b):
        m = x.mean(-1, keepdims=True)
        v = ((x - m) ** 2).mean(-1, keepdims=True)
        return (x - m) / jnp.sqrt(v + LN_EPS) * g + b

    x = ln(mha(dec, dec, t_mask, p["attn1_wqkv"], p["attn1_bqkv"],
               p["attn1_wo"], p["attn1_bo"]) + dec, p["ln1_g"], p["ln1_b"])
    if enc is not None:
        x = ln(mha(x, enc, s_mask, p["attn2_wqkv"], p["attn2_bqkv"],
                   p["attn2_wo"], p["attn2_bo"]) + x, p["ln2_g"], p["ln2_b"])
    h = jnp.maximum(x @ p["ffn_w1"] + p["ffn_b1"], 0.0)
    y = h @ p["ffn_w2"] + p["ffn_b2"]
    return ln(y + x, p["ln3_g"], p["ln3_b"])


# ----------------------------------------------------------------------------
# Deterministic parameter init
# ----------------------------------------------------------------------------

def init_params(key, d_model, n_head, hidden):
    def nrm(k, shape, scale=0.05):
        return (scale * jax.random.normal(k, shape)).astype(jnp.float32)

    ks = jax.random.split(key, 12)
    p = {
        "attn1_wqkv": nrm(ks[0], (d_model, 3 * d_model)),
        "attn1_bqkv": nrm(ks[1], (3 * d_model,)),
        "attn1_wo": nrm(ks[2], (d_model, d_model)),
        "attn1_bo": nrm(ks[3], (d_model,)),
        "attn2_wqkv": nrm(ks[4], (d_model, 3 * d_model)),
        "attn2_bqkv": nrm(ks[5], (3 * d_model,)),
        "attn2_wo": nrm(ks[6], (d_model, d_model)),
        "attn2_bo": nrm(ks[7], (d_model,)),
        "ffn_w1": nrm(ks[8], (d_model, hidden)),
        "ffn_b1": nrm(ks[9], (hidden,)),
        "ffn_w2": nrm(ks[10], (hidden, d_model)),
        "ffn_b2": nrm(ks[11], (d_model,)),
    }
    for i in (1, 2, 3):
        p[f"ln{i}_g"] = jnp.ones((d_model,), jnp.float32)
        p[f"ln{i}_b"] = jnp.zeros((d_model,), jnp.float32)
    return p


# ----------------------------------------------------------------------------
# Main
# ----------------------------------------------------------------------------

if __name__ == "__main__":
    d_model, n_head, hidden = 32, 4, 64
    B, S_dec, S_enc = 2, 8, 8

    key = jax.random.PRNGKey(0)
    k_param, k_dec, k_enc = jax.random.split(key, 3)

    params = init_params(k_param, d_model, n_head, hidden)
    dec = jax.random.normal(k_dec, (B, S_dec, d_model), dtype=jnp.float32)
    enc = jax.random.normal(k_enc, (B, S_enc, d_model), dtype=jnp.float32)

    # causal target mask [B, S_dec, S_dec]; full source mask [B, S_dec, S_enc]
    t_mask = jnp.broadcast_to(
        jnp.tril(jnp.ones((S_dec, S_dec), jnp.float32))[None, :, :],
        (B, S_dec, S_dec))
    s_mask = jnp.ones((B, S_dec, S_enc), jnp.float32)

    out = decoder_layer(dec, enc, t_mask, s_mask, params, n_head)
    jax.block_until_ready(out)

    ref = reference_decoder_layer(dec, enc, t_mask, s_mask, params, n_head)

    assert out.shape == (B, S_dec, d_model)
    assert bool(jnp.all(jnp.isfinite(out)))
    max_err = float(jnp.max(jnp.abs(out - ref)))
    assert bool(jnp.allclose(out, ref, atol=5e-3, rtol=5e-3)), max_err
    print("KERNEL_OK")
</pallas_src>

<mosaic_0001>
module attributes {stable_mosaic.version = 11 : i64} {
  func.func @_mha_proj_ln_kernel(%arg0: i32, %arg1: i32, %arg2: memref<1x8x32xf32, #tpu.memory_space<vmem>>, %arg3: memref<32x96xf32, #tpu.memory_space<vmem>>, %arg4: memref<1x96xf32, #tpu.memory_space<vmem>>, %arg5: memref<1x8x8xi8, #tpu.memory_space<vmem>>, %arg6: memref<32x32xf32, #tpu.memory_space<vmem>>, %arg7: memref<1x32xf32, #tpu.memory_space<vmem>>, %arg8: memref<1x32xf32, #tpu.memory_space<vmem>>, %arg9: memref<1x32xf32, #tpu.memory_space<vmem>>, %arg10: memref<1x8x32xf32, #tpu.memory_space<vmem>>) attributes {dimension_semantics = [#tpu.dimension_semantics<parallel>, #tpu.dimension_semantics<parallel>], iteration_bounds = array<i64: 2, 1>, scalar_prefetch = 0 : i64, scratch_operands = 0 : i64, tpu.core_type = #tpu.core_type<tc>, window_params = [{transform_indices = @transform_0, window_bounds = array<i64: 1, 8, 32>}, {pipeline_mode = #tpu.pipeline_mode<synchronous>, transform_indices = @transform_1, window_bounds = array<i64: 32, 96>}, {pipeline_mode = #tpu.pipeline_mode<synchronous>, transform_indices = @transform_2, window_bounds = array<i64: 1, 96>}, {transform_indices = @transform_3, window_bounds = array<i64: 1, 8, 8>}, {pipeline_mode = #tpu.pipeline_mode<synchronous>, transform_indices = @transform_4, window_bounds = array<i64: 32, 32>}, {pipeline_mode = #tpu.pipeline_mode<synchronous>, transform_indices = @transform_5, window_bounds = array<i64: 1, 32>}, {pipeline_mode = #tpu.pipeline_mode<synchronous>, transform_indices = @transform_6, window_bounds = array<i64: 1, 32>}, {pipeline_mode = #tpu.pipeline_mode<synchronous>, transform_indices = @transform_7, window_bounds = array<i64: 1, 32>}, {transform_indices = @transform_8, window_bounds = array<i64: 1, 8, 32>}]} {
    %c0 = arith.constant 0 : index
    %c0_0 = arith.constant 0 : index
    %c0_1 = arith.constant 0 : index
    %0 = vector.load %arg2[%c0, %c0_0, %c0_1] : memref<1x8x32xf32, #tpu.memory_space<vmem>>, vector<1x8x32xf32>
    %1 = vector.shape_cast %0 : vector<1x8x32xf32> to vector<8x32xf32>
    %c0_2 = arith.constant 0 : index
    %c0_3 = arith.constant 0 : index
    %2 = vector.load %arg3[%c0_2, %c0_3] : memref<32x96xf32, #tpu.memory_space<vmem>>, vector<32x96xf32>
    %c0_4 = arith.constant 0 : index
    %c0_5 = arith.constant 0 : index
    %3 = vector.load %arg4[%c0_4, %c0_5] : memref<1x96xf32, #tpu.memory_space<vmem>>, vector<1x96xf32>
    %cst = arith.constant dense<0.000000e+00> : vector<8x96xf32>
    %4 = tpu.matmul %1, %2, %cst {dimension_numbers = #tpu.dot_dimension_numbers<[1], [0], [0], [1], [0, 0, 1, 1], [], []>} : vector<8x32xf32>, vector<32x96xf32>, vector<8x96xf32> -> vector<8x96xf32>
    %5 = vector.broadcast %3 : vector<1x96xf32> to vector<8x96xf32>
    %6 = arith.addf %4, %5 : vector<8x96xf32>
    %7 = vector.extract_strided_slice %6 {offsets = [0, 0], sizes = [8, 32], strides = [1, 1]} : vector<8x96xf32> to vector<8x32xf32>
    %8 = vector.extract_strided_slice %6 {offsets = [0, 32], sizes = [8, 32], strides = [1, 1]} : vector<8x96xf32> to vector<8x32xf32>
    %9 = vector.extract_strided_slice %6 {offsets = [0, 64], sizes = [8, 32], strides = [1, 1]} : vector<8x96xf32> to vector<8x32xf32>
    %10 = vector.shape_cast %7 : vector<8x32xf32> to vector<8x4x8xf32>
    %11 = tpu.transpose %10, [1, 0, 2] : vector<8x4x8xf32> -> vector<4x8x8xf32>
    %12 = vector.shape_cast %8 : vector<8x32xf32> to vector<8x4x8xf32>
    %13 = tpu.transpose %12, [1, 0, 2] : vector<8x4x8xf32> -> vector<4x8x8xf32>
    %14 = vector.shape_cast %9 : vector<8x32xf32> to vector<8x4x8xf32>
    %15 = tpu.transpose %14, [1, 0, 2] : vector<8x4x8xf32> -> vector<4x8x8xf32>
    %cst_6 = arith.constant dense<0.000000e+00> : vector<4x8x8xf32>
    %16 = tpu.matmul %11, %13, %cst_6 {dimension_numbers = #tpu.dot_dimension_numbers<[2], [2], [1], [1], [0, 0, 0, 1, 1, 1], [0], [0]>} : vector<4x8x8xf32>, vector<4x8x8xf32>, vector<4x8x8xf32> -> vector<4x8x8xf32>
    %cst_7 = arith.constant 0.353553385 : f32
    %17 = vector.broadcast %cst_7 : f32 to vector<4x8x8xf32>
    %18 = arith.mulf %16, %17 : vector<4x8x8xf32>
    %c0_8 = arith.constant 0 : index
    %c0_9 = arith.constant 0 : index
    %c0_10 = arith.constant 0 : index
    %19 = vector.load %arg5[%c0_8, %c0_9, %c0_10] : memref<1x8x8xi8, #tpu.memory_space<vmem>>, vector<1x8x8xi8>
    %20 = vector.shape_cast %19 : vector<1x8x8xi8> to vector<8x8xi8>
    %c0_i8 = arith.constant 0 : i8
    %21 = vector.broadcast %c0_i8 : i8 to vector<8x8xi8>
    %22 = arith.cmpi ne, %20, %21 : vector<8x8xi8>
    %23 = vector.shape_cast %22 : vector<8x8xi1> to vector<1x8x8xi1>
    %cst_11 = arith.constant -1.000000e+04 : f32
    %24 = vector.shape_cast %23 : vector<1x8x8xi1> to vector<1x8x8xi1>
    %25 = vector.broadcast %24 : vector<1x8x8xi1> to vector<4x8x8xi1>
    %26 = vector.broadcast %cst_11 : f32 to vector<4x8x8xf32>
    %27 = arith.select %25, %18, %26 : vector<4x8x8xi1>, vector<4x8x8xf32>
    %cst_12 = arith.constant dense<0xFF800000> : vector<4x8xf32>
    %28 = vector.multi_reduction <maximumf>, %27, %cst_12 [2] : vector<4x8x8xf32> to vector<4x8xf32>
    %29 = vector.shape_cast %28 : vector<4x8xf32> to vector<4x8x1xf32>
    %30 = vector.broadcast %29 : vector<4x8x1xf32> to vector<4x8x8xf32>
    %31 = arith.subf %27, %30 : vector<4x8x8xf32>
    %32 = math.exp %31 : vector<4x8x8xf32>
    %cst_13 = arith.constant dense<0.000000e+00> : vector<4x8xf32>
    %33 = vector.multi_reduction <add>, %32, %cst_13 [2] : vector<4x8x8xf32> to vector<4x8xf32>
    %34 = vector.shape_cast %33 : vector<4x8xf32> to vector<4x8x1xf32>
    %35 = tpu.reciprocal %34 {approx = true} : vector<4x8x1xf32> -> vector<4x8x1xf32>
    %36 = vector.broadcast %35 : vector<4x8x1xf32> to vector<4x8x8xf32>
    %37 = arith.mulf %32, %36 : vector<4x8x8xf32>
    %cst_14 = arith.constant dense<0.000000e+00> : vector<4x8x8xf32>
    %38 = tpu.matmul %37, %15, %cst_14 {dimension_numbers = #tpu.dot_dimension_numbers<[2], [1], [1], [2], [0, 0, 0, 1, 1, 2], [0], [0]>} : vector<4x8x8xf32>, vector<4x8x8xf32>, vector<4x8x8xf32> -> vector<4x8x8xf32>
    %39 = tpu.transpose %38, [1, 0, 2] : vector<4x8x8xf32> -> vector<8x4x8xf32>
    %40 = vector.shape_cast %39 : vector<8x4x8xf32> to vector<8x32xf32>
    %c0_15 = arith.constant 0 : index
    %c0_16 = arith.constant 0 : index
    %41 = vector.load %arg6[%c0_15, %c0_16] : memref<32x32xf32, #tpu.memory_space<vmem>>, vector<32x32xf32>
    %cst_17 = arith.constant dense<0.000000e+00> : vector<8x32xf32>
    %42 = tpu.matmul %40, %41, %cst_17 {dimension_numbers = #tpu.dot_dimension_numbers<[1], [0], [0], [1], [0, 0, 1, 1], [], []>} : vector<8x32xf32>, vector<32x32xf32>, vector<8x32xf32> -> vector<8x32xf32>
    %c0_18 = arith.constant 0 : index
    %c0_19 = arith.constant 0 : index
    %43 = vector.load %arg7[%c0_18, %c0_19] : memref<1x32xf32, #tpu.memory_space<vmem>>, vector<1x32xf32>
    %44 = vector.broadcast %43 : vector<1x32xf32> to vector<8x32xf32>
    %45 = arith.addf %42, %44 : vector<8x32xf32>
    %46 = arith.addf %45, %1 : vector<8x32xf32>
    %cst_20 = arith.constant dense<0.000000e+00> : vector<8xf32>
    %47 = vector.multi_reduction <add>, %46, %cst_20 [1] : vector<8x32xf32> to vector<8xf32>
    %48 = vector.shape_cast %47 : vector<8xf32> to vector<8x1xf32>
    %cst_21 = arith.constant 3.200000e+01 : f32
    %49 = vector.broadcast %cst_21 : f32 to vector<8x1xf32>
    %50 = arith.divf %48, %49 : vector<8x1xf32>
    %51 = vector.broadcast %50 : vector<8x1xf32> to vector<8x32xf32>
    %52 = arith.subf %46, %51 : vector<8x32xf32>
    %53 = arith.mulf %52, %52 : vector<8x32xf32>
    %cst_22 = arith.constant dense<0.000000e+00> : vector<8xf32>
    %54 = vector.multi_reduction <add>, %53, %cst_22 [1] : vector<8x32xf32> to vector<8xf32>
    %55 = vector.shape_cast %54 : vector<8xf32> to vector<8x1xf32>
    %cst_23 = arith.constant 3.200000e+01 : f32
    %56 = vector.broadcast %cst_23 : f32 to vector<8x1xf32>
    %57 = arith.divf %55, %56 : vector<8x1xf32>
    %58 = vector.broadcast %50 : vector<8x1xf32> to vector<8x32xf32>
    %59 = arith.subf %46, %58 : vector<8x32xf32>
    %cst_24 = arith.constant 9.99999996E-13 : f32
    %60 = vector.broadcast %cst_24 : f32 to vector<8x1xf32>
    %61 = arith.addf %57, %60 : vector<8x1xf32>
    %62 = math.rsqrt %61 : vector<8x1xf32>
    %63 = vector.broadcast %62 : vector<8x1xf32> to vector<8x32xf32>
    %64 = arith.mulf %59, %63 : vector<8x32xf32>
    %c0_25 = arith.constant 0 : index
    %c0_26 = arith.constant 0 : index
    %65 = vector.load %arg8[%c0_25, %c0_26] : memref<1x32xf32, #tpu.memory_space<vmem>>, vector<1x32xf32>
    %66 = vector.broadcast %65 : vector<1x32xf32> to vector<8x32xf32>
    %67 = arith.mulf %64, %66 : vector<8x32xf32>
    %c0_27 = arith.constant 0 : index
    %c0_28 = arith.constant 0 : index
    %68 = vector.load %arg9[%c0_27, %c0_28] : memref<1x32xf32, #tpu.memory_space<vmem>>, vector<1x32xf32>
    %69 = vector.broadcast %68 : vector<1x32xf32> to vector<8x32xf32>
    %70 = arith.addf %67, %69 : vector<8x32xf32>
    %c0_29 = arith.constant 0 : index
    %c0_30 = arith.constant 0 : index
    %c0_31 = arith.constant 0 : index
    %71 = vector.load %arg10[%c0_29, %c0_30, %c0_31] : memref<1x8x32xf32, #tpu.memory_space<vmem>>, vector<1x8x32xf32>
    %72 = vector.shape_cast %71 : vector<1x8x32xf32> to vector<8x32xf32>
    %73 = vector.shape_cast %70 : vector<8x32xf32> to vector<1x8x32xf32>
    tpu.vector_store %arg10[%c0_29, %c0_30, %c0_31], %73 {strides = array<i32>} : memref<1x8x32xf32, #tpu.memory_space<vmem>>, vector<1x8x32xf32>,
    return
  }
  func.func @transform_0(%arg0: i32, %arg1: i32) -> (i32, i32, i32) {
    %c0_i32 = arith.constant 0 : i32
    %c0_i32_0 = arith.constant 0 : i32
    return %arg0, %arg1, %c0_i32 : i32, i32, i32
  }
  func.func @transform_1(%arg0: i32, %arg1: i32) -> (i32, i32) {
    %c0_i32 = arith.constant 0 : i32
    %c0_i32_0 = arith.constant 0 : i32
    %c0_i32_1 = arith.constant 0 : i32
    return %c0_i32, %c0_i32_0 : i32, i32
  }
  func.func @transform_2(%arg0: i32, %arg1: i32) -> (i32, i32) {
    %c0_i32 = arith.constant 0 : i32
    %c0_i32_0 = arith.constant 0 : i32
    %c0_i32_1 = arith.constant 0 : i32
    return %c0_i32, %c0_i32_0 : i32, i32
  }
  func.func @transform_3(%arg0: i32, %arg1: i32) -> (i32, i32, i32) {
    %c0_i32 = arith.constant 0 : i32
    %c0_i32_0 = arith.constant 0 : i32
    return %arg0, %arg1, %c0_i32 : i32, i32, i32
  }
  func.func @transform_4(%arg0: i32, %arg1: i32) -> (i32, i32) {
    %c0_i32 = arith.constant 0 : i32
    %c0_i32_0 = arith.constant 0 : i32
    %c0_i32_1 = arith.constant 0 : i32
    return %c0_i32, %c0_i32_0 : i32, i32
  }
  func.func @transform_5(%arg0: i32, %arg1: i32) -> (i32, i32) {
    %c0_i32 = arith.constant 0 : i32
    %c0_i32_0 = arith.constant 0 : i32
    %c0_i32_1 = arith.constant 0 : i32
    return %c0_i32, %c0_i32_0 : i32, i32
  }
  func.func @transform_6(%arg0: i32, %arg1: i32) -> (i32, i32) {
    %c0_i32 = arith.constant 0 : i32
    %c0_i32_0 = arith.constant 0 : i32
    %c0_i32_1 = arith.constant 0 : i32
    return %c0_i32, %c0_i32_0 : i32, i32
  }
  func.func @transform_7(%arg0: i32, %arg1: i32) -> (i32, i32) {
    %c0_i32 = arith.constant 0 : i32
    %c0_i32_0 = arith.constant 0 : i32
    %c0_i32_1 = arith.constant 0 : i32
    return %c0_i32, %c0_i32_0 : i32, i32
  }
  func.func @transform_8(%arg0: i32, %arg1: i32) -> (i32, i32, i32) {
    %c0_i32 = arith.constant 0 : i32
    %c0_i32_0 = arith.constant 0 : i32
    return %arg0, %arg1, %c0_i32 : i32, i32, i32
  }
}

</mosaic_0001>

<llo_original>
// kernel: tpu_custom_call.1
$region0: #{tpu_custom_call.1}
  #allocation0 [shape = 'u32[]', space=smem, size = 0x4, offset = 0x4, fixed_abs, tag = 'smem constant byte address 0x4 - core index']
  #allocation1 [shape = 'u32[144,128]{1,0:T(1,128)}', space=vmem, size = 0x12000, scoped, tag = 'internal scratch']
  %s0 = inlined_call_operand.hbm [shape: f32[2,8,32], index: 0, kind: input, shape index: {}]
  %s1 = inlined_call_operand.hbm [shape: f32[32,96], index: 1, kind: input, shape index: {}]
  %s2 = inlined_call_operand.hbm [shape: f32[1,96], index: 2, kind: input, shape index: {}]
  %s3 = inlined_call_operand.hbm [shape: s8[2,8,8], index: 3, kind: input, shape index: {}]
  %s4 = inlined_call_operand.hbm [shape: f32[32,32], index: 4, kind: input, shape index: {}]
  %s5 = inlined_call_operand.hbm [shape: f32[1,32], index: 5, kind: input, shape index: {}]
  %s6 = inlined_call_operand.hbm [shape: f32[1,32], index: 6, kind: input, shape index: {}]
  %s7 = inlined_call_operand.hbm [shape: f32[1,32], index: 7, kind: input, shape index: {}]
  %s8 = inlined_call_operand.hbm [shape: f32[2,8,32], index: 8, kind: output, shape index: {}]
  %s9 = sld [smem:[#allocation0]]
  $region97: #{tpu_custom_call.1} parent=0
    _
  %s11 = ssub.s32 1, %s9
  %s12 = scalar_select 0, %s11, %s9
  $region1: #{tpu_custom_call.1} parent=0
    #allocation2 [shape = 'u8[8192]{0}', space=vmem, size = 0x2000, scoped, tag = 'input window, operand 0']
    #allocation3 [shape = 's32[2]{0}', space=sflag, size = 0x8, scoped, tag = 'scoped memory for tpu_custom_call.1']
    #allocation4 [shape = 's32[2]{0}', space=sflag, size = 0x8, scoped, tag = 'scoped memory for tpu_custom_call.1']
    #allocation5 [shape = 'u8[16384]{0}', space=vmem, size = 0x4000, scoped, tag = 'input window, operand 1, single buffered']
    #allocation6 [shape = 's32[1]{0}', space=sflag, size = 0x4, scoped, tag = 'scoped memory for tpu_custom_call.1']
    #allocation7 [shape = 'u8[512]{0}', space=vmem, size = 0x400, scoped, tag = 'input window, operand 2, single buffered']
    #allocation8 [shape = 'u8[2048]{0}', space=vmem, size = 0x800, scoped, tag = 'input window, operand 3']
    #allocation9 [shape = 's32[2]{0}', space=sflag, size = 0x8, scoped, tag = 'scoped memory for tpu_custom_call.1']
    #allocation10 [shape = 'u8[16384]{0}', space=vmem, size = 0x4000, scoped, tag = 'input window, operand 4, single buffered']
    #allocation11 [shape = 'u8[512]{0}', space=vmem, size = 0x400, scoped, tag = 'input window, operand 5, single buffered']
    #allocation12 [shape = 's32[1]{0}', space=sflag, size = 0x4, scoped, tag = 'scoped memory for tpu_custom_call.1']
    #allocation13 [shape = 'u8[512]{0}', space=vmem, size = 0x400, scoped, tag = 'input window, operand 6, single buffered']
    #allocation14 [shape = 'u8[512]{0}', space=vmem, size = 0x400, scoped, tag = 'input window, operand 7, single buffered']
    #allocation15 [shape = 's32[1]{0}', space=sflag, size = 0x4, scoped, tag = 'scoped memory for tpu_custom_call.1']
    #allocation16 [shape = 'u8[8192]{0}', space=vmem, size = 0x2000, scoped, tag = 'output window, operand 0']
    %13 = vsyncpa [#allocation3], 0
    %s14 = scalar_lea.sflag [#allocation3], 1
    %15 = vsyncpa %s14, 0
    %16 = vsyncpa [#allocation6], 0
    %17 = vsyncpa [#allocation9], 0
    %s18 = scalar_lea.sflag [#allocation9], 1
    %19 = vsyncpa %s18, 0
    %20 = vsyncpa [#allocation12], 0
    %21 = vsyncpa [#allocation15], 0
    %22 = vsyncpa [#allocation4], 0
    %s23 = scalar_lea.sflag [#allocation4], 1
    %24 = vsyncpa %s23, 0
    loop: start=0, step=1, limit=4
    $region2: #{tpu_custom_call.1} parent=1 // loop_pre_header
      _
    $region3: #{tpu_custom_call.1} parent=1 // loop_header
      %s26 = sphi 0, %s30
      %p27 = scmp.ge.s32.totalorder %s26, 4
      %s33 = sphi 0, %s45
      %s34 = sphi 0, %s41
      %s35 = sphi 0, %s33
      %s36 = sphi 0, %s34
      %s37 = sphi 0, %s35
      %s38 = sphi 0, %s36
      %s50 = sphi 0, %s52
      %s53 = sphi 0, %s50
      %s54 = sphi 0, %s53
      %s70 = sphi 0, %s54
      %s74 = sphi 0, %s74
      %s76 = sphi 0, %s74
      %s77 = sphi 0, %s76
      %s91 = sphi 0, %s77
      %s95 = sphi 0, %s95
      %s97 = sphi 0, %s95
      %s98 = sphi 0, %s97
      %s112 = sphi 0, %s98
      %s120 = sphi 0, %s122
      %s123 = sphi 0, %s120
      %s124 = sphi 0, %s123
      %s140 = sphi 0, %s124
      %s144 = sphi 0, %s144
      %s146 = sphi 0, %s144
      %s147 = sphi 0, %s146
      %s161 = sphi 0, %s147
      %s165 = sphi 0, %s165
      %s167 = sphi 0, %s165
      %s168 = sphi 0, %s167
      %s182 = sphi 0, %s168
      %s186 = sphi 0, %s186
      %s188 = sphi 0, %s186
      %s189 = sphi 0, %s188
      %s203 = sphi 0, %s189
      %s207 = sphi 0, %s207
      %s209 = sphi 0, %s207
      %s210 = sphi 0, %s209
      %s224 = sphi 0, %s210
      %s232 = sphi 0, %s234
      %s235 = sphi 0, %s232
      %s236 = sphi 0, %s235
      %s252 = sphi 0, %s236
    $region4: #{tpu_custom_call.1} parent=1 // loop_header_branch
      %29 = sbr.rel (%p27) target = $region8
    $region5: #{tpu_custom_call.1} parent=1 // loop_body
      %s31 = ssub.s32 %s26, 1
      %s32 = ssub.s32 %s26, 2
      %s39 = sadd.s32 1, %s34
      %p40 = scmp.ge.s32.totalorder %s39, 1
      %s41 = scalar_select %p40, 0, %s39
      %s42 = sadd.s32 1, %s33
      %s43 = scalar_select %p40, %s42, %s33
      %p44 = scmp.ge.s32.totalorder %s43, 2
      %s45 = scalar_select %p44, 0, %s43
      %s46 = ssub.s32 %s33, %s45
      %s47 = ssub.s32 %s34, %s41
      %s48 = sor.u32 %s46, %s47
      %p49 = scmp.eq.s32.totalorder %s48, 0
      %s51 = sadd.s32 %s50, 1
      %s52 = scalar_select %p49, %s50, %s51
      %p55 = pneg %p49
      %p56 = scmp.eq.s32.totalorder %s26, 1
      %p57 = por %p55, %p56
      %p58 = scmp.ne.s32.totalorder %s50, %s53
      %p59 = scmp.eq.s32.totalorder %s26, 0
      %p60 = por %p58, %p59
      %p61 = scmp.ne.s32.totalorder %s50, %s53
      %p62 = scmp.eq.s32.totalorder %s31, 1
      %p63 = por %p61, %p62
      %p64 = scmp.ne.s32.totalorder %s53, %s54
      %p65 = scmp.eq.s32.totalorder %s31, 0
      %p66 = por %p64, %p65
      %p67 = scmp.ne.s32.totalorder %s53, %s54
      %p68 = scmp.eq.s32.totalorder %s32, 1
      %p69 = por %p67, %p68
      %p71 = scmp.ne.s32.totalorder %s54, %s70
      %p72 = scmp.eq.s32.totalorder %s32, 0
      %p73 = por %p71, %p72
      %s75 = sadd.s32 %s74, 1
      %p78 = scmp.eq.s32.totalorder %s26, 1
      %p79 = scmp.ne.s32.totalorder %s74, %s76
      %p80 = scmp.eq.s32.totalorder %s26, 0
      %p81 = por %p79, %p80
      %p82 = scmp.ne.s32.totalorder %s74, %s76
      %p83 = scmp.eq.s32.totalorder %s31, 1
      %p84 = por %p82, %p83
      %p85 = scmp.ne.s32.totalorder %s76, %s77
      %p86 = scmp.eq.s32.totalorder %s31, 0
      %p87 = por %p85, %p86
      %p88 = scmp.ne.s32.totalorder %s76, %s77
      %p89 = scmp.eq.s32.totalorder %s32, 1
      %p90 = por %p88, %p89
      %p92 = scmp.ne.s32.totalorder %s77, %s91
      %p93 = scmp.eq.s32.totalorder %s32, 0
      %p94 = por %p92, %p93
      %s96 = sadd.s32 %s95, 1
      %p99 = scmp.eq.s32.totalorder %s26, 1
      %p100 = scmp.ne.s32.totalorder %s95, %s97
      %p101 = scmp.eq.s32.totalorder %s26, 0
      %p102 = por %p100, %p101
      %p103 = scmp.ne.s32.totalorder %s95, %s97
      %p104 = scmp.eq.s32.totalorder %s31, 1
      %p105 = por %p103, %p104
      %p106 = scmp.ne.s32.totalorder %s97, %s98
      %p107 = scmp.eq.s32.totalorder %s31, 0
      %p108 = por %p106, %p107
      %p109 = scmp.ne.s32.totalorder %s97, %s98
      %p110 = scmp.eq.s32.totalorder %s32, 1
      %p111 = por %p109, %p110
      %p113 = scmp.ne.s32.totalorder %s98, %s112
      %p114 = scmp.eq.s32.totalorder %s32, 0
      %p115 = por %p113, %p114
      %s116 = ssub.s32 %s33, %s45
      %s117 = ssub.s32 %s34, %s41
      %s118 = sor.u32 %s116, %s117
      %p119 = scmp.eq.s32.totalorder %s118, 0
      %s121 = sadd.s32 %s120, 1
      %s122 = scalar_select %p119, %s120, %s121
      %p125 = pneg %p119
      %p126 = scmp.eq.s32.totalorder %s26, 1
      %p127 = por %p125, %p126
      %p128 = scmp.ne.s32.totalorder %s120, %s123
      %p129 = scmp.eq.s32.totalorder %s26, 0
      %p130 = por %p128, %p129
      %p131 = scmp.ne.s32.totalorder %s120, %s123
      %p132 = scmp.eq.s32.totalorder %s31, 1
      %p133 = por %p131, %p132
      %p134 = scmp.ne.s32.totalorder %s123, %s124
      %p135 = scmp.eq.s32.totalorder %s31, 0
      %p136 = por %p134, %p135
      %p137 = scmp.ne.s32.totalorder %s123, %s124
      %p138 = scmp.eq.s32.totalorder %s32, 1
      %p139 = por %p137, %p138
      %p141 = scmp.ne.s32.totalorder %s124, %s140
      %p142 = scmp.eq.s32.totalorder %s32, 0
      %p143 = por %p141, %p142
      %s145 = sadd.s32 %s144, 1
      %p148 = scmp.eq.s32.totalorder %s26, 1
      %p149 = scmp.ne.s32.totalorder %s144, %s146
      %p150 = scmp.eq.s32.totalorder %s26, 0
      %p151 = por %p149, %p150
      %p152 = scmp.ne.s32.totalorder %s144, %s146
      %p153 = scmp.eq.s32.totalorder %s31, 1
      %p154 = por %p152, %p153
      %p155 = scmp.ne.s32.totalorder %s146, %s147
      %p156 = scmp.eq.s32.totalorder %s31, 0
      %p157 = por %p155, %p156
      %p158 = scmp.ne.s32.totalorder %s146, %s147
      %p159 = scmp.eq.s32.totalorder %s32, 1
      %p160 = por %p158, %p159
      %p162 = scmp.ne.s32.totalorder %s147, %s161
      %p163 = scmp.eq.s32.totalorder %s32, 0
      %p164 = por %p162, %p163
      %s166 = sadd.s32 %s165, 1
      %p169 = scmp.eq.s32.totalorder %s26, 1
      %p170 = scmp.ne.s32.totalorder %s165, %s167
      %p171 = scmp.eq.s32.totalorder %s26, 0
      %p172 = por %p170, %p171
      %p173 = scmp.ne.s32.totalorder %s165, %s167
      %p174 = scmp.eq.s32.totalorder %s31, 1
      %p175 = por %p173, %p174
      %p176 = scmp.ne.s32.totalorder %s167, %s168
      %p177 = scmp.eq.s32.totalorder %s31, 0
      %p178 = por %p176, %p177
      %p179 = scmp.ne.s32.totalorder %s167, %s168
      %p180 = scmp.eq.s32.totalorder %s32, 1
      %p181 = por %p179, %p180
      %p183 = scmp.ne.s32.totalorder %s168, %s182
      %p184 = scmp.eq.s32.totalorder %s32, 0
      %p185 = por %p183, %p184
      %s187 = sadd.s32 %s186, 1
      %p190 = scmp.eq.s32.totalorder %s26, 1
      %p191 = scmp.ne.s32.totalorder %s186, %s188
      %p192 = scmp.eq.s32.totalorder %s26, 0
      %p193 = por %p191, %p192
      %p194 = scmp.ne.s32.totalorder %s186, %s188
      %p195 = scmp.eq.s32.totalorder %s31, 1
      %p196 = por %p194, %p195
      %p197 = scmp.ne.s32.totalorder %s188, %s189
      %p198 = scmp.eq.s32.totalorder %s31, 0
      %p199 = por %p197, %p198
      %p200 = scmp.ne.s32.totalorder %s188, %s189
      %p201 = scmp.eq.s32.totalorder %s32, 1
      %p202 = por %p200, %p201
      %p204 = scmp.ne.s32.totalorder %s189, %s203
      %p205 = scmp.eq.s32.totalorder %s32, 0
      %p206 = por %p204, %p205
      %s208 = sadd.s32 %s207, 1
      %p211 = scmp.eq.s32.totalorder %s26, 1
      %p212 = scmp.ne.s32.totalorder %s207, %s209
      %p213 = scmp.eq.s32.totalorder %s26, 0
      %p214 = por %p212, %p213
      %p215 = scmp.ne.s32.totalorder %s207, %s209
      %p216 = scmp.eq.s32.totalorder %s31, 1
      %p217 = por %p215, %p216
      %p218 = scmp.ne.s32.totalorder %s209, %s210
      %p219 = scmp.eq.s32.totalorder %s31, 0
      %p220 = por %p218, %p219
      %p221 = scmp.ne.s32.totalorder %s209, %s210
      %p222 = scmp.eq.s32.totalorder %s32, 1
      %p223 = por %p221, %p222
      %p225 = scmp.ne.s32.totalorder %s210, %s224
      %p226 = scmp.eq.s32.totalorder %s32, 0
      %p227 = por %p225, %p226
      %s228 = ssub.s32 %s33, %s45
      %s229 = ssub.s32 %s34, %s41
      %s230 = sor.u32 %s228, %s229
      %p231 = scmp.eq.s32.totalorder %s230, 0
      %s233 = sadd.s32 %s232, 1
      %s234 = scalar_select %p231, %s232, %s233
      %p237 = pneg %p231
      %p238 = scmp.eq.s32.totalorder %s26, 1
      %p239 = por %p237, %p238
      %p240 = scmp.ne.s32.totalorder %s232, %s235
      %p241 = scmp.eq.s32.totalorder %s26, 0
      %p242 = por %p240, %p241
      %p243 = scmp.ne.s32.totalorder %s232, %s235
      %p244 = scmp.eq.s32.totalorder %s31, 1
      %p245 = por %p243, %p244
      %p246 = scmp.ne.s32.totalorder %s235, %s236
      %p247 = scmp.eq.s32.totalorder %s31, 0
      %p248 = por %p246, %p247
      %p249 = scmp.ne.s32.totalorder %s235, %s236
      %p250 = scmp.eq.s32.totalorder %s32, 1
      %p251 = por %p249, %p250
      %p253 = scmp.ne.s32.totalorder %s236, %s252
      %p254 = scmp.eq.s32.totalorder %s32, 0
      %p255 = por %p253, %p254
      %p256 = scmp.le.s32.totalorder 1, %s26
      %p257 = scmp.lt.s32.totalorder %s26, 3
      %p258 = pnand %p256, %p257
      %p259 = pneg %p258
      // Predicated region
      $region9: #{tpu_custom_call.1} parent=5 // pred_check
        _
      $region10: #{tpu_custom_call.1} parent=5 // pred_check_branch
        %261 = sbr.rel (%p258) target = $region12
      $region11: #{tpu_custom_call.1} parent=5 // pred_region
        %s262 = ssub.s32 %s26, 1
        // Predicated region
        $region13: #{tpu_custom_call.1} parent=11 // pred_check
          %p263 = pneg %p87
        $region14: #{tpu_custom_call.1} parent=11 // pred_check_branch
          %265 = sbr.rel (%p263) target = $region16
        $region15: #{tpu_custom_call.1} parent=11 // pred_region
          %s267 = ssub.s32 512, 512
          %268 = vsyncadd [#allocation6], %s267
          %s269 = sshll.u32 [#allocation5], 4
          %s270 = int_to_ptr.vmem [resolvable:$true] %s269
          %275 = dma.hbm_to_vmem [thread:$0]  %s1, 512, %s270, [#allocation6], 128, 128, 8
        $region16: #{tpu_custom_call.1} parent=11 // pred_fallthru
          _
        // Predicated region
        $region17: #{tpu_custom_call.1} parent=11 // pred_check
          %p276 = pneg %p108
        $region18: #{tpu_custom_call.1} parent=11 // pred_check_branch
          %278 = sbr.rel (%p276) target = $region20
        $region19: #{tpu_custom_call.1} parent=11 // pred_region
          %s280 = ssub.s32 16, 16
          %281 = vsyncadd [#allocation6], %s280
          %s283 = sshll.u32 [#allocation7], 4
          %s284 = int_to_ptr.vmem [resolvable:$true] %s283
          %286 = dma.hbm_to_vmem [thread:$0]  %s2, 16, %s284, [#allocation6]
        $region20: #{tpu_custom_call.1} parent=11 // pred_fallthru
          _
        // Predicated region
        $region21: #{tpu_custom_call.1} parent=11 // pred_check
          %p287 = pneg %p157
        $region22: #{tpu_custom_call.1} parent=11 // pred_check_branch
          %289 = sbr.rel (%p287) target = $region24
        $region23: #{tpu_custom_call.1} parent=11 // pred_region
          %s291 = ssub.s32 512, 512
          %292 = vsyncadd [#allocation9], %s291
          %s293 = sshll.u32 [#allocation10], 4
          %s294 = int_to_ptr.vmem [resolvable:$true] %s293
          %299 = dma.hbm_to_vmem [thread:$0]  %s4, 512, %s294, [#allocation9], 128, 128, 8
        $region24: #{tpu_custom_call.1} parent=11 // pred_fallthru
          _
        // Predicated region
        $region25: #{tpu_custom_call.1} parent=11 // pred_check
          %p300 = pneg %p178
        $region26: #{tpu_custom_call.1} parent=11 // pred_check_branch
          %302 = sbr.rel (%p300) target = $region28
        $region27: #{tpu_custom_call.1} parent=11 // pred_region
          %s304 = ssub.s32 16, 16
          %305 = vsyncadd [#allocation12], %s304
          %s307 = sshll.u32 [#allocation11], 4
          %s308 = int_to_ptr.vmem [resolvable:$true] %s307
          %310 = dma.hbm_to_vmem [thread:$0]  %s5, 16, %s308, [#allocation12]
        $region28: #{tpu_custom_call.1} parent=11 // pred_fallthru
          _
        // Predicated region
        $region29: #{tpu_custom_call.1} parent=11 // pred_check
          %p311 = pneg %p199
        $region30: #{tpu_custom_call.1} parent=11 // pred_check_branch
          %313 = sbr.rel (%p311) target = $region32
        $region31: #{tpu_custom_call.1} parent=11 // pred_region
          %s315 = ssub.s32 16, 16
          %316 = vsyncadd [#allocation12], %s315
          %s318 = sshll.u32 [#allocation13], 4
          %s319 = int_to_ptr.vmem [resolvable:$true] %s318
          %321 = dma.hbm_to_vmem [thread:$0]  %s6, 16, %s319, [#allocation12]
        $region32: #{tpu_custom_call.1} parent=11 // pred_fallthru
          _
        // Predicated region
        $region33: #{tpu_custom_call.1} parent=11 // pred_check
          %p322 = pneg %p220
        $region34: #{tpu_custom_call.1} parent=11 // pred_check_branch
          %324 = sbr.rel (%p322) target = $region36
        $region35: #{tpu_custom_call.1} parent=11 // pred_region
          %s326 = ssub.s32 16, 16
          %327 = vsyncadd [#allocation15], %s326
          %s329 = sshll.u32 [#allocation14], 4
          %s330 = int_to_ptr.vmem [resolvable:$true] %s329
          %332 = dma.hbm_to_vmem [thread:$0]  %s7, 16, %s330, [#allocation15]
        $region36: #{tpu_custom_call.1} parent=11 // pred_fallthru
          _
      $region12: #{tpu_custom_call.1} parent=5 // pred_fallthru
        _
      %p333 = scmp.lt.s32.totalorder %s26, 2
      // Predicated region
      $region37: #{tpu_custom_call.1} parent=5 // pred_check
        %p334 = pneg %p333
      $region38: #{tpu_custom_call.1} parent=5 // pred_check_branch
        %336 = sbr.rel (%p334) target = $region40
      $region39: #{tpu_custom_call.1} parent=5 // pred_region
        // Predicated region
        $region41: #{tpu_custom_call.1} parent=39 // pred_check
          %p337 = pneg %p60
        $region42: #{tpu_custom_call.1} parent=39 // pred_check_branch
          %339 = sbr.rel (%p337) target = $region44
        $region43: #{tpu_custom_call.1} parent=39 // pred_region
          %s340 = sand.u32 %s50, 1
          %s341 = scalar_lea.sflag [#allocation3], %s340
          %s342 = sand.u32 %s50, 1
          %s343 = smul.addr %s342, 8
          %s344 = scalar_lea.vmem [#allocation2], %s343
          %s346 = ssub.s32 128, 128
          %347 = vsyncadd %s341, %s346
          %s348 = sadd.s32 %s34, %s33
          %s349 = smul.addr %s348, 128
          %s350 = scalar_lea.hbm %s0, %s349
          %s352 = sshll.u32 %s344, 4
          %s353 = int_to_ptr.vmem [resolvable:$true] %s352
          %355 = dma.hbm_to_vmem [thread:$0]  %s350, 128, %s353, %s341
        $region44: #{tpu_custom_call.1} parent=39 // pred_fallthru
          _
        // Predicated region
        $region45: #{tpu_custom_call.1} parent=39 // pred_check
          %p356 = pneg %p130
        $region46: #{tpu_custom_call.1} parent=39 // pred_check_branch
          %358 = sbr.rel (%p356) target = $region48
        $region47: #{tpu_custom_call.1} parent=39 // pred_region
          %s359 = sand.u32 %s26, 1
          %s360 = scalar_lea.sflag [#allocation9], %s359
          %s361 = sand.u32 %s120, 1
          %s362 = smul.addr %s361, 2
          %s363 = scalar_lea.vmem [#allocation8], %s362
          %s365 = ssub.s32 32, 32
          %366 = vsyncadd %s360, %s365
          %s367 = sadd.s32 %s34, %s33
          %s368 = smul.addr %s367, 32
          %s369 = scalar_lea.hbm %s3, %s368
          %s371 = sshll.u32 %s363, 4
          %s372 = int_to_ptr.vmem [resolvable:$true] %s371
          %374 = dma.hbm_to_vmem [thread:$0]  %s369, 32, %s372, %s360
        $region48: #{tpu_custom_call.1} parent=39 // pred_fallthru
          _
      $region40: #{tpu_custom_call.1} parent=5 // pred_fallthru
        _
      %p375 = scmp.le.s32.totalorder 1, %s26
      %p376 = scmp.lt.s32.totalorder %s26, 3
      %p377 = pnand %p375, %p376
      %p378 = pneg %p377
      // Predicated region
      $region49: #{tpu_custom_call.1} parent=5 // pred_check
        _
      $region50: #{tpu_custom_call.1} parent=5 // pred_check_branch
        %380 = sbr.rel (%p377) target = $region52
      $region51: #{tpu_custom_call.1} parent=5 // pred_region
        %s381 = ssub.s32 %s26, 1
        %s382 = sand.u32 %s53, 1
        %s383 = scalar_lea.sflag [#allocation3], %s382
        %s384 = sand.u32 %s53, 1
        %s385 = smul.addr %s384, 8
        %s386 = scalar_lea.vmem [#allocation2], %s385
        // Predicated region
        $region53: #{tpu_custom_call.1} parent=51 // pred_check
          %p387 = pneg %p66
        $region54: #{tpu_custom_call.1} parent=51 // pred_check_branch
          %389 = sbr.rel (%p387) target = $region56
        $region55: #{tpu_custom_call.1} parent=51 // pred_region
          %390 = dma.done %s383, 128
        $region56: #{tpu_custom_call.1} parent=51 // pred_fallthru
          _
        // Predicated region
        $region57: #{tpu_custom_call.1} parent=51 // pred_check
          %p391 = pneg %p87
        $region58: #{tpu_custom_call.1} parent=51 // pred_check_branch
          %393 = sbr.rel (%p391) target = $region60
        $region59: #{tpu_custom_call.1} parent=51 // pred_region
          %394 = dma.done [#allocation6], 512
        $region60: #{tpu_custom_call.1} parent=51 // pred_fallthru
          _
        // Predicated region
        $region61: #{tpu_custom_call.1} parent=51 // pred_check
          %p395 = pneg %p108
        $region62: #{tpu_custom_call.1} parent=51 // pred_check_branch
          %397 = sbr.rel (%p395) target = $region64
        $region63: #{tpu_custom_call.1} parent=51 // pred_region
          %398 = dma.done [#allocation6], 16
        $region64: #{tpu_custom_call.1} parent=51 // pred_fallthru
          _
        %s399 = sand.u32 %s31, 1
        %s400 = scalar_lea.sflag [#allocation9], %s399
        %s401 = sand.u32 %s123, 1
        %s402 = smul.addr %s401, 2
        %s403 = scalar_lea.vmem [#allocation8], %s402
        // Predicated region
        $region65: #{tpu_custom_call.1} parent=51 // pred_check
          %p404 = pneg %p136
        $region66: #{tpu_custom_call.1} parent=51 // pred_check_branch
          %406 = sbr.rel (%p404) target = $region68
        $region67: #{tpu_custom_call.1} parent=51 // pred_region
          %407 = dma.done %s400, 32
        $region68: #{tpu_custom_call.1} parent=51 // pred_fallthru
          _
        // Predicated region
        $region69: #{tpu_custom_call.1} parent=51 // pred_check
          %p408 = pneg %p157
        $region70: #{tpu_custom_call.1} parent=51 // pred_check_branch
          %410 = sbr.rel (%p408) target = $region72
        $region71: #{tpu_custom_call.1} parent=51 // pred_region
          %411 = dma.done [#allocation9], 512
        $region72: #{tpu_custom_call.1} parent=51 // pred_fallthru
          _
        // Predicated region
        $region73: #{tpu_custom_call.1} parent=51 // pred_check
          %p412 = pneg %p178
        $region74: #{tpu_custom_call.1} parent=51 // pred_check_branch
          %414 = sbr.rel (%p412) target = $region76
        $region75: #{tpu_custom_call.1} parent=51 // pred_region
          %415 = dma.done [#allocation12], 16
        $region76: #{tpu_custom_call.1} parent=51 // pred_fallthru
          _
        // Predicated region
        $region77: #{tpu_custom_call.1} parent=51 // pred_check
          %p416 = pneg %p199
        $region78: #{tpu_custom_call.1} parent=51 // pred_check_branch
          %418 = sbr.rel (%p416) target = $region80
        $region79: #{tpu_custom_call.1} parent=51 // pred_region
          %419 = dma.done [#allocation12], 16
        $region80: #{tpu_custom_call.1} parent=51 // pred_fallthru
          _
        // Predicated region
        $region81: #{tpu_custom_call.1} parent=51 // pred_check
          %p420 = pneg %p220
        $region82: #{tpu_custom_call.1} parent=51 // pred_check_branch
          %422 = sbr.rel (%p420) target = $region84
        $region83: #{tpu_custom_call.1} parent=51 // pred_region
          %423 = dma.done [#allocation15], 16
        $region84: #{tpu_custom_call.1} parent=51 // pred_fallthru
          _
        %s424 = sand.u32 %s53, 1
        %s425 = scalar_lea.sflag [#allocation3], %s424
        %s426 = sand.u32 %s53, 1
        %s427 = smul.addr %s426, 8
        %s428 = scalar_lea.vmem [#allocation2], %s427
        %p429 = pneg %p66
        %p430 = pneg %p63
        %p431 = pneg %p87
        %p432 = pneg %p84
        %p433 = pneg %p108
        %p434 = pneg %p105
        %s435 = sand.u32 %s31, 1
        %s436 = scalar_lea.sflag [#allocation9], %s435
        %s437 = sand.u32 %s123, 1
        %s438 = smul.addr %s437, 2
        %s439 = scalar_lea.vmem [#allocation8], %s438
        %p440 = pneg %p136
        %p441 = pneg %p133
        %p442 = pneg %p157
        %p443 = pneg %p154
        %p444 = pneg %p178
        %p445 = pneg %p175
        %p446 = pneg %p199
        %p447 = pneg %p196
        %p448 = pneg %p220
        %p449 = pneg %p217
        %p450 = pneg %p248
        %p451 = pneg %p245
        %s452 = sand.u32 %s235, 1
        %s453 = scalar_lea.sflag [#allocation4], %s452
        %s454 = sand.u32 %s235, 1
        %s455 = smul.addr %s454, 8
        %s456 = scalar_lea.vmem [#allocation16], %s455
        %v459 = vld [vmem:[%s386] sm:$0xff]
        %v460 = vld [vmem:[#allocation5] sm:$0xff]
        %v461 = vld [vmem:[#allocation5 + $0x8] sm:$0xff]
        %v462 = vld [vmem:[#allocation5 + $0x10] sm:$0xff]
        %v463 = vld [vmem:[#allocation5 + $0x18] sm:$0xff]
        %v464 = vld [vmem:[#allocation7] sm:$0x1]
        %v466 = vlaneseq
        %v467 = vshrl.u32 %v466, 7
        %v468 = vsub.s32 0, %v467
        %v469 = vrot.slane %v464, %v468
        %vm471 = vcmask 261120
        %v473 = vsel %vm471, %v459, 0
        %475 = vmatprep.subr.mxu0 0.0
        %476 = vmatpush1.msra.mxu0 %v460
        %477 = vmatprep.subr.mxu0 0.0
        %478 = vmatpush1.msra.mxu0 %v461
        %479 = vmatprep.subr.mxu0 0.0
        %480 = vmatpush1.msra.mxu0 %v462
        %481 = vmatprep.subr.mxu0 0.0
        %482 = vmatpush1.msra.mxu0 %v463
        %483 = vmatprep.subr.mxu0 0.0
        %484 = vmatpush1.msra.mxu0 0.0
        %485 = vmatprep.subr.mxu0 0.0
        %486 = vmatpush1.msra.mxu0 0.0
        %487 = vmatprep.subr.mxu0 0.0
        %488 = vmatpush1.msra.mxu0 0.0
        %489 = vmatprep.subr.mxu0 0.0
        %490 = vmatpush1.msra.mxu0 0.0
        %491 = vmatprep.subr.mxu0 0.0
        %492 = vmatpush1.msra.mxu0 0.0
        %493 = vmatprep.subr.mxu0 0.0
        %494 = vmatpush1.msra.mxu0 0.0
        %495 = vmatprep.subr.mxu0 0.0
        %496 = vmatpush1.msra.mxu0 0.0
        %497 = vmatprep.subr.mxu0 0.0
        %498 = vmatpush1.msra.mxu0 0.0
        %499 = vmatprep.subr.mxu0 0.0
        %500 = vmatpush1.msra.mxu0 0.0
        %501 = vmatprep.subr.mxu0 0.0
        %502 = vmatpush1.msra.mxu0 0.0
        %503 = vmatprep.subr.mxu0 0.0
        %504 = vmatpush1.msra.mxu0 0.0
        %505 = vmatprep.subr.mxu0 0.0
        %506 = vmatpush1.msra.mxu0 0.0
        %507 = vmatprep.subr.mxu0 0.0
        %508 = vmatpush1.msra.mxu0 0.0
        %509 = vmatprep.subr.mxu0 0.0
        %510 = vmatpush1.msra.mxu0 0.0
        %511 = vmatprep.subr.mxu0 0.0
        %512 = vmatpush1.msra.mxu0 0.0
        %513 = vmatprep.subr.mxu0 0.0
        %514 = vmatpush1.msra.mxu0 0.0
        %515 = vmatprep.subr.mxu0 0.0
        %516 = vmatpush1.msra.mxu0 0.0
        %517 = vmatprep.subr.mxu0 0.0
        %518 = vmatpush1.msra.mxu0 0.0
        %519 = vmatprep.subr.mxu0 0.0
        %520 = vmatpush1.msra.mxu0 0.0
        %521 = vmatprep.subr.mxu0 0.0
        %522 = vmatpush1.msra.mxu0 0.0
        %523 = vmatprep.subr.mxu0 0.0
        %524 = vmatpush1.msra.mxu0 0.0
        %525 = vmatprep.subr.mxu0 0.0
        %526 = vmatpush1.msra.mxu0 0.0
        %527 = vmatprep.subr.mxu0 0.0
        %528 = vmatpush1.msra.mxu0 0.0
        %529 = vmatprep.subr.mxu0 0.0
        %530 = vmatpush1.msra.mxu0 0.0
        %531 = vmatprep.subr.mxu0 0.0
        %532 = vmatpush1.msra.mxu0 0.0
        %533 = vmatprep.subr.mxu0 0.0
        %534 = vmatpush1.msra.mxu0 0.0
        %535 = vmatprep.subr.mxu0 0.0
        %536 = vmatpush1.msra.mxu0 0.0
        %537 = vmatprep.subr.mxu0 0.0
        %538 = vmatpush1.msra.mxu0 0.0
        %539 = vmatprep.mubr.f32.mxu0 0.0
        %540 = vmatmul.mubr.f32.gmra.mrb[0].mxu0 %v473
        %v541 = vpop.f32.mrb[0].mxu0
        %v542 = vadd.f32 %v469, %v541
        %v543 = vpop.f32.mrb[0].mxu0
        %544 = vdwg.mxu0
        %546 = vrot.lane.b32.xlu0 %v542, 120
        %v547 = vpop.permute.xlu0 %546
        %549 = vrot.lane.b32.xlu0 %v542, 112
        %v550 = vpop.permute.xlu0 %549
        %552 = vrot.lane.b32.xlu0 %v542, 104
        %v553 = vpop.permute.xlu0 %552
        %v555 = vcombine.low %v542, %v550
        %v556 = vcombine.high %v542, %v550
        %v558 = vunpack.c.l.s4 1983009808
        %v559 = vunpack.c.0.s8 %v558
        %v560 = vlaneseq
        %v561 = vshrl.u32 %v560, 7
        %v562 = vsub.s32 %v559, %v561
        %v563 = vrot.slane %v555, %v562
        %v565 = vunpack.c.l.s4 1983009808
        %v566 = vunpack.c.0.s8 %v565
        %v567 = vlaneseq
        %v568 = vshrl.u32 %v567, 7
        %v569 = vsub.s32 %v566, %v568
        %v570 = vrot.slane %v556, %v569
        %v571 = vcombine.low %v547, %v553
        %v572 = vcombine.high %v547, %v553
        %v574 = vunpack.c.l.s4 1983009808
        %v575 = vunpack.c.0.s8 %v574
        %v576 = vlaneseq
        %v577 = vshrl.u32 %v576, 7
        %v578 = vsub.s32 %v575, %v577
        %v579 = vrot.slane %v571, %v578
        %v581 = vunpack.c.l.s4 1983009808
        %v582 = vunpack.c.0.s8 %v581
        %v583 = vlaneseq
        %v584 = vshrl.u32 %v583, 7
        %v585 = vsub.s32 %v582, %v584
        %v586 = vrot.slane %v572, %v585
        %v587 = vcombine.low %v563, %v579
        %v588 = vcombine.high %v563, %v579
        %v590 = vunpack.c.l.s4 1934713408
        %v591 = vunpack.c.0.s8 %v590
        %v592 = vlaneseq
        %v593 = vshrl.u32 %v592, 7
        %v594 = vsub.s32 %v591, %v593
        %v595 = vrot.slane %v587, %v594
        %v597 = vunpack.c.l.s4 1934713408
        %v598 = vunpack.c.0.s8 %v597
        %v599 = vlaneseq
        %v600 = vshrl.u32 %v599, 7
        %v601 = vsub.s32 %v598, %v600
        %v602 = vrot.slane %v588, %v601
        %v603 = vcombine.low %v570, %v586
        %v604 = vcombine.high %v570, %v586
        %v606 = vunpack.c.l.s4 1934713408
        %v607 = vunpack.c.0.s8 %v606
        %v608 = vlaneseq
        %v609 = vshrl.u32 %v608, 7
        %v610 = vsub.s32 %v607, %v609
        %v611 = vrot.slane %v603, %v610
        %v613 = vunpack.c.l.s4 1934713408
        %v614 = vunpack.c.0.s8 %v613
        %v615 = vlaneseq
        %v616 = vshrl.u32 %v615, 7
        %v617 = vsub.s32 %v614, %v616
        %v618 = vrot.slane %v604, %v617
        %v619 = vcombine.high %v595, 0.0
        %v620 = vcombine.high %v602, 0.0
        %v621 = vcombine.high %v611, 0.0
        %v622 = vcombine.high %v618, 0.0
        %v623 = vcombine.low %v595, %v602
        %v625 = vunpack.c.l.s4 1983009808
        %v626 = vunpack.c.0.s8 %v625
        %v627 = vlaneseq
        %v628 = vshrl.u32 %v627, 7
        %v629 = vsub.s32 %v626, %v628
        %v630 = vrot.slane %v623, %v629
        %v631 = vcombine.low %v619, %v620
        %v633 = vunpack.c.l.s4 1983009808
        %v634 = vunpack.c.0.s8 %v633
        %v635 = vlaneseq
        %v636 = vshrl.u32 %v635, 7
        %v637 = vsub.s32 %v634, %v636
        %v638 = vrot.slane %v631, %v637
        %v639 = vcombine.low %v611, %v618
        %v641 = vunpack.c.l.s4 1983009808
        %v642 = vunpack.c.0.s8 %v641
        %v643 = vlaneseq
        %v644 = vshrl.u32 %v643, 7
        %v645 = vsub.s32 %v642, %v644
        %v646 = vrot.slane %v639, %v645
        %v647 = vcombine.low %v621, %v622
        %v649 = vunpack.c.l.s4 1983009808
        %v650 = vunpack.c.0.s8 %v649
        %v651 = vlaneseq
        %v652 = vshrl.u32 %v651, 7
        %v653 = vsub.s32 %v650, %v652
        %v654 = vrot.slane %v647, %v653
        %v655 = vcombine.low %v630, %v638
        %v656 = vcombine.high %v630, %v638
        %v658 = vunpack.c.l.s4 1934713408
        %v659 = vunpack.c.0.s8 %v658
        %v660 = vlaneseq
        %v661 = vshrl.u32 %v660, 7
        %v662 = vsub.s32 %v659, %v661
        %v663 = vrot.slane %v655, %v662
        %v665 = vunpack.c.l.s4 1934713408
        %v666 = vunpack.c.0.s8 %v665
        %v667 = vlaneseq
        %v668 = vshrl.u32 %v667, 7
        %v669 = vsub.s32 %v666, %v668
        %v670 = vrot.slane %v656, %v669
        %v671 = vcombine.low %v646, %v654
        %v672 = vcombine.high %v646, %v654
        %v674 = vunpack.c.l.s4 1934713408
        %v675 = vunpack.c.0.s8 %v674
        %v676 = vlaneseq
        %v677 = vshrl.u32 %v676, 7
        %v678 = vsub.s32 %v675, %v677
        %v679 = vrot.slane %v671, %v678
        %v681 = vunpack.c.l.s4 1934713408
        %v682 = vunpack.c.0.s8 %v681
        %v683 = vlaneseq
        %v684 = vshrl.u32 %v683, 7
        %v685 = vsub.s32 %v682, %v684
        %v686 = vrot.slane %v672, %v685
        %v687 = vcombine.low %v663, %v679
        %v688 = vcombine.high %v663, %v679
        %v689 = vcombine.low %v670, %v686
        %v690 = vcombine.high %v670, %v686
        %691 = vrot.lane.b32.xlu0 %v542, 96
        %v692 = vpop.permute.xlu0 %691
        %693 = vrot.lane.b32.xlu0 %v547, 96
        %v694 = vpop.permute.xlu0 %693
        %695 = vrot.lane.b32.xlu0 %v550, 96
        %v696 = vpop.permute.xlu0 %695
        %697 = vrot.lane.b32.xlu0 %v553, 96
        %v698 = vpop.permute.xlu0 %697
        %v703 = vcombine.low %v692, %v696
        %v704 = vcombine.high %v692, %v696
        %v706 = vunpack.c.l.s4 1983009808
        %v707 = vunpack.c.0.s8 %v706
        %v708 = vlaneseq
        %v709 = vshrl.u32 %v708, 7
        %v710 = vsub.s32 %v707, %v709
        %v711 = vrot.slane %v703, %v710
        %v713 = vunpack.c.l.s4 1983009808
        %v714 = vunpack.c.0.s8 %v713
        %v715 = vlaneseq
        %v716 = vshrl.u32 %v715, 7
        %v717 = vsub.s32 %v714, %v716
        %v718 = vrot.slane %v704, %v717
        %v719 = vcombine.low %v694, %v698
        %v720 = vcombine.high %v694, %v698
        %v722 = vunpack.c.l.s4 1983009808
        %v723 = vunpack.c.0.s8 %v722
        %v724 = vlaneseq
        %v725 = vshrl.u32 %v724, 7
        %v726 = vsub.s32 %v723, %v725
        %v727 = vrot.slane %v719, %v726
        %v729 = vunpack.c.l.s4 1983009808
        %v730 = vunpack.c.0.s8 %v729
        %v731 = vlaneseq
        %v732 = vshrl.u32 %v731, 7
        %v733 = vsub.s32 %v730, %v732
        %v734 = vrot.slane %v720, %v733
        %v735 = vcombine.low %v711, %v727
        %v736 = vcombine.high %v711, %v727
        %v738 = vunpack.c.l.s4 1934713408
        %v739 = vunpack.c.0.s8 %v738
        %v740 = vlaneseq
        %v741 = vshrl.u32 %v740, 7
        %v742 = vsub.s32 %v739, %v741
        %v743 = vrot.slane %v735, %v742
        %v745 = vunpack.c.l.s4 1934713408
        %v746 = vunpack.c.0.s8 %v745
        %v747 = vlaneseq
        %v748 = vshrl.u32 %v747, 7
        %v749 = vsub.s32 %v746, %v748
        %v750 = vrot.slane %v736, %v749
        %v751 = vcombine.low %v718, %v734
        %v752 = vcombine.high %v718, %v734
        %v754 = vunpack.c.l.s4 1934713408
        %v755 = vunpack.c.0.s8 %v754
        %v756 = vlaneseq
        %v757 = vshrl.u32 %v756, 7
        %v758 = vsub.s32 %v755, %v757
        %v759 = vrot.slane %v751, %v758
        %v761 = vunpack.c.l.s4 1934713408
        %v762 = vunpack.c.0.s8 %v761
        %v763 = vlaneseq
        %v764 = vshrl.u32 %v763, 7
        %v765 = vsub.s32 %v762, %v764
        %v766 = vrot.slane %v752, %v765
        %v767 = vcombine.high %v743, 0.0
        %v768 = vcombine.high %v750, 0.0
        %v769 = vcombine.high %v759, 0.0
        %v770 = vcombine.high %v766, 0.0
        %v771 = vcombine.low %v743, %v750
        %v773 = vunpack.c.l.s4 1983009808
        %v774 = vunpack.c.0.s8 %v773
        %v775 = vlaneseq
        %v776 = vshrl.u32 %v775, 7
        %v777 = vsub.s32 %v774, %v776
        %v778 = vrot.slane %v771, %v777
        %v779 = vcombine.low %v767, %v768
        %v781 = vunpack.c.l.s4 1983009808
        %v782 = vunpack.c.0.s8 %v781
        %v783 = vlaneseq
        %v784 = vshrl.u32 %v783, 7
        %v785 = vsub.s32 %v782, %v784
        %v786 = vrot.slane %v779, %v785
        %v787 = vcombine.low %v759, %v766
        %v789 = vunpack.c.l.s4 1983009808
        %v790 = vunpack.c.0.s8 %v789
        %v791 = vlaneseq
        %v792 = vshrl.u32 %v791, 7
        %v793 = vsub.s32 %v790, %v792
        %v794 = vrot.slane %v787, %v793
        %v795 = vcombine.low %v769, %v770
        %v797 = vunpack.c.l.s4 1983009808
        %v798 = vunpack.c.0.s8 %v797
        %v799 = vlaneseq
        %v800 = vshrl.u32 %v799, 7
        %v801 = vsub.s32 %v798, %v800
        %v802 = vrot.slane %v795, %v801
        %v803 = vcombine.low %v778, %v786
        %v804 = vcombine.high %v778, %v786
        %v806 = vunpack.c.l.s4 1934713408
        %v807 = vunpack.c.0.s8 %v806
        %v808 = vlaneseq
        %v809 = vshrl.u32 %v808, 7
        %v810 = vsub.s32 %v807, %v809
        %v811 = vrot.slane %v803, %v810
        %v813 = vunpack.c.l.s4 1934713408
        %v814 = vunpack.c.0.s8 %v813
        %v815 = vlaneseq
        %v816 = vshrl.u32 %v815, 7
        %v817 = vsub.s32 %v814, %v816
        %v818 = vrot.slane %v804, %v817
        %v819 = vcombine.low %v794, %v802
        %v820 = vcombine.high %v794, %v802
        %v822 = vunpack.c.l.s4 1934713408
        %v823 = vunpack.c.0.s8 %v822
        %v824 = vlaneseq
        %v825 = vshrl.u32 %v824, 7
        %v826 = vsub.s32 %v823, %v825
        %v827 = vrot.slane %v819, %v826
        %v829 = vunpack.c.l.s4 1934713408
        %v830 = vunpack.c.0.s8 %v829
        %v831 = vlaneseq
        %v832 = vshrl.u32 %v831, 7
        %v833 = vsub.s32 %v830, %v832
        %v834 = vrot.slane %v820, %v833
        %v835 = vcombine.low %v811, %v827
        %v836 = vcombine.high %v811, %v827
        %v837 = vcombine.low %v818, %v834
        %v838 = vcombine.high %v818, %v834
        %839 = vrot.lane.b32.xlu0 %v542, 64
        %v840 = vpop.permute.xlu0 %839
        %841 = vrot.lane.b32.xlu0 %v547, 64
        %v842 = vpop.permute.xlu0 %841
        %843 = vrot.lane.b32.xlu0 %v550, 64
        %v844 = vpop.permute.xlu0 %843
        %845 = vrot.lane.b32.xlu0 %v553, 64
        %v846 = vpop.permute.xlu0 %845
        %v851 = vcombine.low %v840, %v844
        %v852 = vcombine.high %v840, %v844
        %v854 = vunpack.c.l.s4 1983009808
        %v855 = vunpack.c.0.s8 %v854
        %v856 = vlaneseq
        %v857 = vshrl.u32 %v856, 7
        %v858 = vsub.s32 %v855, %v857
        %v859 = vrot.slane %v851, %v858
        %v861 = vunpack.c.l.s4 1983009808
        %v862 = vunpack.c.0.s8 %v861
        %v863 = vlaneseq
        %v864 = vshrl.u32 %v863, 7
        %v865 = vsub.s32 %v862, %v864
        %v866 = vrot.slane %v852, %v865
        %v867 = vcombine.low %v842, %v846
        %v868 = vcombine.high %v842, %v846
        %v870 = vunpack.c.l.s4 1983009808
        %v871 = vunpack.c.0.s8 %v870
        %v872 = vlaneseq
        %v873 = vshrl.u32 %v872, 7
        %v874 = vsub.s32 %v871, %v873
        %v875 = vrot.slane %v867, %v874
        %v877 = vunpack.c.l.s4 1983009808
        %v878 = vunpack.c.0.s8 %v877
        %v879 = vlaneseq
        %v880 = vshrl.u32 %v879, 7
        %v881 = vsub.s32 %v878, %v880
        %v882 = vrot.slane %v868, %v881
        %v883 = vcombine.low %v859, %v875
        %v884 = vcombine.high %v859, %v875
        %v886 = vunpack.c.l.s4 1934713408
        %v887 = vunpack.c.0.s8 %v886
        %v888 = vlaneseq
        %v889 = vshrl.u32 %v888, 7
        %v890 = vsub.s32 %v887, %v889
        %v891 = vrot.slane %v883, %v890
        %v893 = vunpack.c.l.s4 1934713408
        %v894 = vunpack.c.0.s8 %v893
        %v895 = vlaneseq
        %v896 = vshrl.u32 %v895, 7
        %v897 = vsub.s32 %v894, %v896
        %v898 = vrot.slane %v884, %v897
        %v899 = vcombine.low %v866, %v882
        %v900 = vcombine.high %v866, %v882
        %v902 = vunpack.c.l.s4 1934713408
        %v903 = vunpack.c.0.s8 %v902
        %v904 = vlaneseq
        %v905 = vshrl.u32 %v904, 7
        %v906 = vsub.s32 %v903, %v905
        %v907 = vrot.slane %v899, %v906
        %v909 = vunpack.c.l.s4 1934713408
        %v910 = vunpack.c.0.s8 %v909
        %v911 = vlaneseq
        %v912 = vshrl.u32 %v911, 7
        %v913 = vsub.s32 %v910, %v912
        %v914 = vrot.slane %v900, %v913
        %v915 = vcombine.high %v891, 0.0
        %v916 = vcombine.high %v898, 0.0
        %v917 = vcombine.high %v907, 0.0
        %v918 = vcombine.high %v914, 0.0
        %v919 = vcombine.low %v891, %v898
        %v921 = vunpack.c.l.s4 1983009808
        %v922 = vunpack.c.0.s8 %v921
        %v923 = vlaneseq
        %v924 = vshrl.u32 %v923, 7
        %v925 = vsub.s32 %v922, %v924
        %v926 = vrot.slane %v919, %v925
        %v927 = vcombine.low %v915, %v916
        %v929 = vunpack.c.l.s4 1983009808
        %v930 = vunpack.c.0.s8 %v929
        %v931 = vlaneseq
        %v932 = vshrl.u32 %v931, 7
        %v933 = vsub.s32 %v930, %v932
        %v934 = vrot.slane %v927, %v933
        %v935 = vcombine.low %v907, %v914
        %v937 = vunpack.c.l.s4 1983009808
        %v938 = vunpack.c.0.s8 %v937
        %v939 = vlaneseq
        %v940 = vshrl.u32 %v939, 7
        %v941 = vsub.s32 %v938, %v940
        %v942 = vrot.slane %v935, %v941
        %v943 = vcombine.low %v917, %v918
        %v945 = vunpack.c.l.s4 1983009808
        %v946 = vunpack.c.0.s8 %v945
        %v947 = vlaneseq
        %v948 = vshrl.u32 %v947, 7
        %v949 = vsub.s32 %v946, %v948
        %v950 = vrot.slane %v943, %v949
        %v951 = vcombine.low %v926, %v934
        %v952 = vcombine.high %v926, %v934
        %v954 = vunpack.c.l.s4 1934713408
        %v955 = vunpack.c.0.s8 %v954
        %v956 = vlaneseq
        %v957 = vshrl.u32 %v956, 7
        %v958 = vsub.s32 %v955, %v957
        %v959 = vrot.slane %v951, %v958
        %v961 = vunpack.c.l.s4 1934713408
        %v962 = vunpack.c.0.s8 %v961
        %v963 = vlaneseq
        %v964 = vshrl.u32 %v963, 7
        %v965 = vsub.s32 %v962, %v964
        %v966 = vrot.slane %v952, %v965
        %v967 = vcombine.low %v942, %v950
        %v968 = vcombine.high %v942, %v950
        %v970 = vunpack.c.l.s4 1934713408
        %v971 = vunpack.c.0.s8 %v970
        %v972 = vlaneseq
        %v973 = vshrl.u32 %v972, 7
        %v974 = vsub.s32 %v971, %v973
        %v975 = vrot.slane %v967, %v974
        %v977 = vunpack.c.l.s4 1934713408
        %v978 = vunpack.c.0.s8 %v977
        %v979 = vlaneseq
        %v980 = vshrl.u32 %v979, 7
        %v981 = vsub.s32 %v978, %v980
        %v982 = vrot.slane %v968, %v981
        %v983 = vcombine.low %v959, %v975
        %v984 = vcombine.high %v959, %v975
        %v985 = vcombine.low %v966, %v982
        %v986 = vcombine.high %v966, %v982
        %vm987 = vcmask 64512
        %v989 = vsel %vm987, %v687, 0
        %v992 = vsel %vm987, %v835, 0
        %994 = vmatprep.subr.mxu0 0.0
        %995 = vmatpush1.xpose.msra.mxu0 %v992
        %996 = vmatprep.subr.mxu0 0.0
        %997 = vmatpush1.xpose.msra.mxu0 0.0
        %998 = vmatprep.subr.mxu0 0.0
        %999 = vmatpush1.xpose.msra.mxu0 0.0
        %1000 = vmatprep.subr.mxu0 0.0
        %1001 = vmatpush1.xpose.msra.mxu0 0.0
        %1002 = vmatprep.subr.mxu0 0.0
        %1003 = vmatpush1.xpose.msra.mxu0 0.0
        %1004 = vmatprep.subr.mxu0 0.0
        %1005 = vmatpush1.xpose.msra.mxu0 0.0
        %1006 = vmatprep.subr.mxu0 0.0
        %1007 = vmatpush1.xpose.msra.mxu0 0.0
        %1008 = vmatprep.subr.mxu0 0.0
        %1009 = vmatpush1.xpose.msra.mxu0 0.0
        %1010 = vmatprep.subr.mxu0 0.0
        %1011 = vmatpush1.xpose.msra.mxu0 0.0
        %1012 = vmatprep.subr.mxu0 0.0
        %1013 = vmatpush1.xpose.msra.mxu0 0.0
        %1014 = vmatprep.subr.mxu0 0.0
        %1015 = vmatpush1.xpose.msra.mxu0 0.0
        %1016 = vmatprep.subr.mxu0 0.0
        %1017 = vmatpush1.xpose.msra.mxu0 0.0
        %1018 = vmatprep.subr.mxu0 0.0
        %1019 = vmatpush1.xpose.msra.mxu0 0.0
        %1020 = vmatprep.subr.mxu0 0.0
        %1021 = vmatpush1.xpose.msra.mxu0 0.0
        %1022 = vmatprep.subr.mxu0 0.0
        %1023 = vmatpush1.xpose.msra.mxu0 0.0
        %1024 = vmatprep.subr.mxu0 0.0
        %1025 = vmatpush1.xpose.msra.mxu0 0.0
        %1026 = vmatprep.subr.mxu0 0.0
        %1027 = vmatpush1.xpose.msra.mxu0 0.0
        %1028 = vmatprep.subr.mxu0 0.0
        %1029 = vmatpush1.xpose.msra.mxu0 0.0
        %1030 = vmatprep.subr.mxu0 0.0
        %1031 = vmatpush1.xpose.msra.mxu0 0.0
        %1032 = vmatprep.subr.mxu0 0.0
        %1033 = vmatpush1.xpose.msra.mxu0 0.0
        %1034 = vmatprep.subr.mxu0 0.0
        %1035 = vmatpush1.xpose.msra.mxu0 0.0
        %1036 = vmatprep.subr.mxu0 0.0
        %1037 = vmatpush1.xpose.msra.mxu0 0.0
        %1038 = vmatprep.subr.mxu0 0.0
        %1039 = vmatpush1.xpose.msra.mxu0 0.0
        %1040 = vmatprep.subr.mxu0 0.0
        %1041 = vmatpush1.xpose.msra.mxu0 0.0
        %1042 = vmatprep.subr.mxu0 0.0
        %1043 = vmatpush1.xpose.msra.mxu0 0.0
        %1044 = vmatprep.subr.mxu0 0.0
        %1045 = vmatpush1.xpose.msra.mxu0 0.0
        %1046 = vmatprep.subr.mxu0 0.0
        %1047 = vmatpush1.xpose.msra.mxu0 0.0
        %1048 = vmatprep.subr.mxu0 0.0
        %1049 = vmatpush1.xpose.msra.mxu0 0.0
        %1050 = vmatprep.subr.mxu0 0.0
        %1051 = vmatpush1.xpose.msra.mxu0 0.0
        %1052 = vmatprep.subr.mxu0 0.0
        %1053 = vmatpush1.xpose.msra.mxu0 0.0
        %1054 = vmatprep.subr.mxu0 0.0
        %1055 = vmatpush1.xpose.msra.mxu0 0.0
        %1056 = vmatprep.subr.mxu0 0.0
        %1057 = vmatpush1.xpose.msra.mxu0 0.0
        %1058 = vmatprep.mubr.f32.mxu0 0.0
        %1059 = vmatmul.mubr.f32.gmra.mrb[0].mxu0 %v989
        %v1060 = vpop.f32.mrb[0].mxu0
        %v1061 = vadd.f32 0.0, %v1060
        %v1062 = vpop.f32.mrb[0].mxu0
        %1063 = vdwg.mxu0
        %v1065 = vsel %vm987, %v688, 0
        %v1068 = vsel %vm987, %v836, 0
        %1070 = vmatprep.subr.mxu0 0.0
        %1071 = vmatpush1.xpose.msra.mxu0 %v1068
        %1072 = vmatprep.subr.mxu0 0.0
        %1073 = vmatpush1.xpose.msra.mxu0 0.0
        %1074 = vmatprep.subr.mxu0 0.0
        %1075 = vmatpush1.xpose.msra.mxu0 0.0
        %1076 = vmatprep.subr.mxu0 0.0
        %1077 = vmatpush1.xpose.msra.mxu0 0.0
        %1078 = vmatprep.subr.mxu0 0.0
        %1079 = vmatpush1.xpose.msra.mxu0 0.0
        %1080 = vmatprep.subr.mxu0 0.0
        %1081 = vmatpush1.xpose.msra.mxu0 0.0
        %1082 = vmatprep.subr.mxu0 0.0
        %1083 = vmatpush1.xpose.msra.mxu0 0.0
        %1084 = vmatprep.subr.mxu0 0.0
        %1085 = vmatpush1.xpose.msra.mxu0 0.0
        %1086 = vmatprep.subr.mxu0 0.0
        %1087 = vmatpush1.xpose.msra.mxu0 0.0
        %1088 = vmatprep.subr.mxu0 0.0
        %1089 = vmatpush1.xpose.msra.mxu0 0.0
        %1090 = vmatprep.subr.mxu0 0.0
        %1091 = vmatpush1.xpose.msra.mxu0 0.0
        %1092 = vmatprep.subr.mxu0 0.0
        %1093 = vmatpush1.xpose.msra.mxu0 0.0
        %1094 = vmatprep.subr.mxu0 0.0
        %1095 = vmatpush1.xpose.msra.mxu0 0.0
        %1096 = vmatprep.subr.mxu0 0.0
        %1097 = vmatpush1.xpose.msra.mxu0 0.0
        %1098 = vmatprep.subr.mxu0 0.0
        %1099 = vmatpush1.xpose.msra.mxu0 0.0
        %1100 = vmatprep.subr.mxu0 0.0
        %1101 = vmatpush1.xpose.msra.mxu0 0.0
        %1102 = vmatprep.subr.mxu0 0.0
        %1103 = vmatpush1.xpose.msra.mxu0 0.0
        %1104 = vmatprep.subr.mxu0 0.0
        %1105 = vmatpush1.xpose.msra.mxu0 0.0
        %1106 = vmatprep.subr.mxu0 0.0
        %1107 = vmatpush1.xpose.msra.mxu0 0.0
        %1108 = vmatprep.subr.mxu0 0.0
        %1109 = vmatpush1.xpose.msra.mxu0 0.0
        %1110 = vmatprep.subr.mxu0 0.0
        %1111 = vmatpush1.xpose.msra.mxu0 0.0
        %1112 = vmatprep.subr.mxu0 0.0
        %1113 = vmatpush1.xpose.msra.mxu0 0.0
        %1114 = vmatprep.subr.mxu0 0.0
        %1115 = vmatpush1.xpose.msra.mxu0 0.0
        %1116 = vmatprep.subr.mxu0 0.0
        %1117 = vmatpush1.xpose.msra.mxu0 0.0
        %1118 = vmatprep.subr.mxu0 0.0
        %1119 = vmatpush1.xpose.msra.mxu0 0.0
        %1120 = vmatprep.subr.mxu0 0.0
        %1121 = vmatpush1.xpose.msra.mxu0 0.0
        %1122 = vmatprep.subr.mxu0 0.0
        %1123 = vmatpush1.xpose.msra.mxu0 0.0
        %1124 = vmatprep.subr.mxu0 0.0
        %1125 = vmatpush1.xpose.msra.mxu0 0.0
        %1126 = vmatprep.subr.mxu0 0.0
        %1127 = vmatpush1.xpose.msra.mxu0 0.0
        %1128 = vmatprep.subr.mxu0 0.0
        %1129 = vmatpush1.xpose.msra.mxu0 0.0
        %1130 = vmatprep.subr.mxu0 0.0
        %1131 = vmatpush1.xpose.msra.mxu0 0.0
        %1132 = vmatprep.subr.mxu0 0.0
        %1133 = vmatpush1.xpose.msra.mxu0 0.0
        %1134 = vmatprep.mubr.f32.mxu0 0.0
        %1135 = vmatmul.mubr.f32.gmra.mrb[0].mxu0 %v1065
        %v1136 = vpop.f32.mrb[0].mxu0
        %v1137 = vadd.f32 0.0, %v1136
        %v1138 = vpop.f32.mrb[0].mxu0
        %1139 = vdwg.mxu0
        %v1141 = vsel %vm987, %v689, 0
        %v1144 = vsel %vm987, %v837, 0
        %1146 = vmatprep.subr.mxu0 0.0
        %1147 = vmatpush1.xpose.msra.mxu0 %v1144
        %1148 = vmatprep.subr.mxu0 0.0
        %1149 = vmatpush1.xpose.msra.mxu0 0.0
        %1150 = vmatprep.subr.mxu0 0.0
        %1151 = vmatpush1.xpose.msra.mxu0 0.0
        %1152 = vmatprep.subr.mxu0 0.0
        %1153 = vmatpush1.xpose.msra.mxu0 0.0
        %1154 = vmatprep.subr.mxu0 0.0
        %1155 = vmatpush1.xpose.msra.mxu0 0.0
        %1156 = vmatprep.subr.mxu0 0.0
        %1157 = vmatpush1.xpose.msra.mxu0 0.0
        %1158 = vmatprep.subr.mxu0 0.0
        %1159 = vmatpush1.xpose.msra.mxu0 0.0
        %1160 = vmatprep.subr.mxu0 0.0
        %1161 = vmatpush1.xpose.msra.mxu0 0.0
        %1162 = vmatprep.subr.mxu0 0.0
        %1163 = vmatpush1.xpose.msra.mxu0 0.0
        %1164 = vmatprep.subr.mxu0 0.0
        %1165 = vmatpush1.xpose.msra.mxu0 0.0
        %1166 = vmatprep.subr.mxu0 0.0
        %1167 = vmatpush1.xpose.msra.mxu0 0.0
        %1168 = vmatprep.subr.mxu0 0.0
        %1169 = vmatpush1.xpose.msra.mxu0 0.0
        %1170 = vmatprep.subr.mxu0 0.0
        %1171 = vmatpush1.xpose.msra.mxu0 0.0
        %1172 = vmatprep.subr.mxu0 0.0
        %1173 = vmatpush1.xpose.msra.mxu0 0.0
        %1174 = vmatprep.subr.mxu0 0.0
        %1175 = vmatpush1.xpose.msra.mxu0 0.0
        %1176 = vmatprep.subr.mxu0 0.0
        %1177 = vmatpush1.xpose.msra.mxu0 0.0
        %1178 = vmatprep.subr.mxu0 0.0
        %1179 = vmatpush1.xpose.msra.mxu0 0.0
        %1180 = vmatprep.subr.mxu0 0.0
        %1181 = vmatpush1.xpose.msra.mxu0 0.0
        %1182 = vmatprep.subr.mxu0 0.0
        %1183 = vmatpush1.xpose.msra.mxu0 0.0
        %1184 = vmatprep.subr.mxu0 0.0
        %1185 = vmatpush1.xpose.msra.mxu0 0.0
        %1186 = vmatprep.subr.mxu0 0.0
        %1187 = vmatpush1.xpose.msra.mxu0 0.0
        %1188 = vmatprep.subr.mxu0 0.0
        %1189 = vmatpush1.xpose.msra.mxu0 0.0
        %1190 = vmatprep.subr.mxu0 0.0
        %1191 = vmatpush1.xpose.msra.mxu0 0.0
        %1192 = vmatprep.subr.mxu0 0.0
        %1193 = vmatpush1.xpose.msra.mxu0 0.0
        %1194 = vmatprep.subr.mxu0 0.0
        %1195 = vmatpush1.xpose.msra.mxu0 0.0
        %1196 = vmatprep.subr.mxu0 0.0
        %1197 = vmatpush1.xpose.msra.mxu0 0.0
        %1198 = vmatprep.subr.mxu0 0.0
        %1199 = vmatpush1.xpose.msra.mxu0 0.0
        %1200 = vmatprep.subr.mxu0 0.0
        %1201 = vmatpush1.xpose.msra.mxu0 0.0
        %1202 = vmatprep.subr.mxu0 0.0
        %1203 = vmatpush1.xpose.msra.mxu0 0.0
        %1204 = vmatprep.subr.mxu0 0.0
        %1205 = vmatpush1.xpose.msra.mxu0 0.0
        %1206 = vmatprep.subr.mxu0 0.0
        %1207 = vmatpush1.xpose.msra.mxu0 0.0
        %1208 = vmatprep.subr.mxu0 0.0
        %1209 = vmatpush1.xpose.msra.mxu0 0.0
        %1210 = vmatprep.mubr.f32.mxu0 0.0
        %1211 = vmatmul.mubr.f32.gmra.mrb[0].mxu0 %v1141
        %v1212 = vpop.f32.mrb[0].mxu0
        %v1213 = vadd.f32 0.0, %v1212
        %v1214 = vpop.f32.mrb[0].mxu0
        %1215 = vdwg.mxu0
        %v1217 = vsel %vm987, %v690, 0
        %v1220 = vsel %vm987, %v838, 0
        %1222 = vmatprep.subr.mxu0 0.0
        %1223 = vmatpush1.xpose.msra.mxu0 %v1220
        %1224 = vmatprep.subr.mxu0 0.0
        %1225 = vmatpush1.xpose.msra.mxu0 0.0
        %1226 = vmatprep.subr.mxu0 0.0
        %1227 = vmatpush1.xpose.msra.mxu0 0.0
        %1228 = vmatprep.subr.mxu0 0.0
        %1229 = vmatpush1.xpose.msra.mxu0 0.0
        %1230 = vmatprep.subr.mxu0 0.0
        %1231 = vmatpush1.xpose.msra.mxu0 0.0
        %1232 = vmatprep.subr.mxu0 0.0
        %1233 = vmatpush1.xpose.msra.mxu0 0.0
        %1234 = vmatprep.subr.mxu0 0.0
        %1235 = vmatpush1.xpose.msra.mxu0 0.0
        %1236 = vmatprep.subr.mxu0 0.0
        %1237 = vmatpush1.xpose.msra.mxu0 0.0
        %1238 = vmatprep.subr.mxu0 0.0
        %1239 = vmatpush1.xpose.msra.mxu0 0.0
        %1240 = vmatprep.subr.mxu0 0.0
        %1241 = vmatpush1.xpose.msra.mxu0 0.0
        %1242 = vmatprep.subr.mxu0 0.0
        %1243 = vmatpush1.xpose.msra.mxu0 0.0
        %1244 = vmatprep.subr.mxu0 0.0
        %1245 = vmatpush1.xpose.msra.mxu0 0.0
        %1246 = vmatprep.subr.mxu0 0.0
        %1247 = vmatpush1.xpose.msra.mxu0 0.0
        %1248 = vmatprep.subr.mxu0 0.0
        %1249 = vmatpush1.xpose.msra.mxu0 0.0
        %1250 = vmatprep.subr.mxu0 0.0
        %1251 = vmatpush1.xpose.msra.mxu0 0.0
        %1252 = vmatprep.subr.mxu0 0.0
        %1253 = vmatpush1.xpose.msra.mxu0 0.0
        %1254 = vmatprep.subr.mxu0 0.0
        %1255 = vmatpush1.xpose.msra.mxu0 0.0
        %1256 = vmatprep.subr.mxu0 0.0
        %1257 = vmatpush1.xpose.msra.mxu0 0.0
        %1258 = vmatprep.subr.mxu0 0.0
        %1259 = vmatpush1.xpose.msra.mxu0 0.0
        %1260 = vmatprep.subr.mxu0 0.0
        %1261 = vmatpush1.xpose.msra.mxu0 0.0
        %1262 = vmatprep.subr.mxu0 0.0
        %1263 = vmatpush1.xpose.msra.mxu0 0.0
        %1264 = vmatprep.subr.mxu0 0.0
        %1265 = vmatpush1.xpose.msra.mxu0 0.0
        %1266 = vmatprep.subr.mxu0 0.0
        %1267 = vmatpush1.xpose.msra.mxu0 0.0
        %1268 = vmatprep.subr.mxu0 0.0
        %1269 = vmatpush1.xpose.msra.mxu0 0.0
        %1270 = vmatprep.subr.mxu0 0.0
        %1271 = vmatpush1.xpose.msra.mxu0 0.0
        %1272 = vmatprep.subr.mxu0 0.0
        %1273 = vmatpush1.xpose.msra.mxu0 0.0
        %1274 = vmatprep.subr.mxu0 0.0
        %1275 = vmatpush1.xpose.msra.mxu0 0.0
        %1276 = vmatprep.subr.mxu0 0.0
        %1277 = vmatpush1.xpose.msra.mxu0 0.0
        %1278 = vmatprep.subr.mxu0 0.0
        %1279 = vmatpush1.xpose.msra.mxu0 0.0
        %1280 = vmatprep.subr.mxu0 0.0
        %1281 = vmatpush1.xpose.msra.mxu0 0.0
        %1282 = vmatprep.subr.mxu0 0.0
        %1283 = vmatpush1.xpose.msra.mxu0 0.0
        %1284 = vmatprep.subr.mxu0 0.0
        %1285 = vmatpush1.xpose.msra.mxu0 0.0
        %1286 = vmatprep.mubr.f32.mxu0 0.0
        %1287 = vmatmul.mubr.f32.gmra.mrb[0].mxu0 %v1217
        %v1288 = vpop.f32.mrb[0].mxu0
        %v1289 = vadd.f32 0.0, %v1288
        %v1290 = vpop.f32.mrb[0].mxu0
        %1291 = vdwg.mxu0
        %v1292 = vmul.f32 %v1061, 0.35355338
        %v1293 = vmul.f32 %v1137, 0.35355338
        %v1294 = vmul.f32 %v1213, 0.35355338
        %v1295 = vmul.f32 %v1289, 0.35355338
        %v1296 = vld [vmem:[%s403] sm:$0x3]
        %vm1297 = vnez %v1296
        %v1298 = vsel %vm1297, 16843009, 0
        %v1299 = vunpack.c.0.s8 %v1298
        %vm1300 = vcmp.ne.s32.totalorder %v1299, 0
        %v1301 = vsel %vm1300, 1, 0
        %vm1302 = vcmp.eq.s32.totalorder %v1301, 1
        %v1303 = vsel %vm1302, %v1292, -10000.0
        %v1304 = vsel %vm1302, %v1293, -10000.0
        %v1305 = vsel %vm1302, %v1294, -10000.0
        %v1306 = vsel %vm1302, %v1295, -10000.0
        %v1307 = vsel %vm987, %v1303, -inf
        %1308 = vmax.xlane.f32.xlu0 %v1307
        %v1309 = vpop.xlane.xlu0 %1308
        %v1310 = vsel %vm987, %v1304, -inf
        %1311 = vmax.xlane.f32.xlu0 %v1310
        %v1312 = vpop.xlane.xlu0 %1311
        %v1313 = vsel %vm987, %v1305, -inf
        %1314 = vmax.xlane.f32.xlu0 %v1313
        %v1315 = vpop.xlane.xlu0 %1314
        %v1316 = vsel %vm987, %v1306, -inf
        %1317 = vmax.xlane.f32.xlu0 %v1316
        %v1318 = vpop.xlane.xlu0 %1317
        %v1319 = vsub.f32 %v1303, %v1309
        %v1320 = vsub.f32 %v1304, %v1312
        %v1321 = vsub.f32 %v1305, %v1315
        %v1322 = vsub.f32 %v1306, %v1318
        %v1323 = vmul.f32 %v1319, 1.442695
        %v1324 = vpow.pop %v1323
        %v1325 = vmul.f32 %v1320, 1.442695
        %v1326 = vpow.pop %v1325
        %v1327 = vmul.f32 %v1321, 1.442695
        %v1328 = vpow.pop %v1327
        %v1329 = vmul.f32 %v1322, 1.442695
        %v1330 = vpow.pop %v1329
        %v1331 = vsel %vm987, %v1324, 0.0
        %1332 = vadd.xlane.f32.xlu0 %v1331
        %v1333 = vpop.xlane.xlu0 %1332
        %v1334 = vsel %vm987, %v1326, 0.0
        %1335 = vadd.xlane.f32.xlu0 %v1334
        %v1336 = vpop.xlane.xlu0 %1335
        %v1337 = vsel %vm987, %v1328, 0.0
        %1338 = vadd.xlane.f32.xlu0 %v1337
        %v1339 = vpop.xlane.xlu0 %1338
        %v1340 = vsel %vm987, %v1330, 0.0
        %1341 = vadd.xlane.f32.xlu0 %v1340
        %v1342 = vpop.xlane.xlu0 %1341
        %v1343 = vrcp.pop %v1333
        %v1344 = vrcp.pop %v1336
        %v1345 = vrcp.pop %v1339
        %v1346 = vrcp.pop %v1342
        %v1347 = vmul.f32 %v1324, %v1343
        %v1348 = vmul.f32 %v1326, %v1344
        %v1349 = vmul.f32 %v1328, %v1345
        %v1350 = vmul.f32 %v1330, %v1346
        %v1352 = vsel %vm987, %v1347, 0
        %1354 = vmatprep.subr.mxu0 0.0
        %1355 = vmatpush1.msra.mxu0 %v983
        %1356 = vmatprep.subr.mxu0 0.0
        %1357 = vmatpush1.msra.mxu0 0.0
        %1358 = vmatprep.subr.mxu0 0.0
        %1359 = vmatpush1.msra.mxu0 0.0
        %1360 = vmatprep.subr.mxu0 0.0
        %1361 = vmatpush1.msra.mxu0 0.0
        %1362 = vmatprep.subr.mxu0 0.0
        %1363 = vmatpush1.msra.mxu0 0.0
        %1364 = vmatprep.subr.mxu0 0.0
        %1365 = vmatpush1.msra.mxu0 0.0
        %1366 = vmatprep.subr.mxu0 0.0
        %1367 = vmatpush1.msra.mxu0 0.0
        %1368 = vmatprep.subr.mxu0 0.0
        %1369 = vmatpush1.msra.mxu0 0.0
        %1370 = vmatprep.subr.mxu0 0.0
        %1371 = vmatpush1.msra.mxu0 0.0
        %1372 = vmatprep.subr.mxu0 0.0
        %1373 = vmatpush1.msra.mxu0 0.0
        %1374 = vmatprep.subr.mxu0 0.0
        %1375 = vmatpush1.msra.mxu0 0.0
        %1376 = vmatprep.subr.mxu0 0.0
        %1377 = vmatpush1.msra.mxu0 0.0
        %1378 = vmatprep.subr.mxu0 0.0
        %1379 = vmatpush1.msra.mxu0 0.0
        %1380 = vmatprep.subr.mxu0 0.0
        %1381 = vmatpush1.msra.mxu0 0.0
        %1382 = vmatprep.subr.mxu0 0.0
        %1383 = vmatpush1.msra.mxu0 0.0
        %1384 = vmatprep.subr.mxu0 0.0
        %1385 = vmatpush1.msra.mxu0 0.0
        %1386 = vmatprep.subr.mxu0 0.0
        %1387 = vmatpush1.msra.mxu0 0.0
        %1388 = vmatprep.subr.mxu0 0.0
        %1389 = vmatpush1.msra.mxu0 0.0
        %1390 = vmatprep.subr.mxu0 0.0
        %1391 = vmatpush1.msra.mxu0 0.0
        %1392 = vmatprep.subr.mxu0 0.0
        %1393 = vmatpush1.msra.mxu0 0.0
        %1394 = vmatprep.subr.mxu0 0.0
        %1395 = vmatpush1.msra.mxu0 0.0
        %1396 = vmatprep.subr.mxu0 0.0
        %1397 = vmatpush1.msra.mxu0 0.0
        %1398 = vmatprep.subr.mxu0 0.0
        %1399 = vmatpush1.msra.mxu0 0.0
        %1400 = vmatprep.subr.mxu0 0.0
        %1401 = vmatpush1.msra.mxu0 0.0
        %1402 = vmatprep.subr.mxu0 0.0
        %1403 = vmatpush1.msra.mxu0 0.0
        %1404 = vmatprep.subr.mxu0 0.0
        %1405 = vmatpush1.msra.mxu0 0.0
        %1406 = vmatprep.subr.mxu0 0.0
        %1407 = vmatpush1.msra.mxu0 0.0
        %1408 = vmatprep.subr.mxu0 0.0
        %1409 = vmatpush1.msra.mxu0 0.0
        %1410 = vmatprep.subr.mxu0 0.0
        %1411 = vmatpush1.msra.mxu0 0.0
        %1412 = vmatprep.subr.mxu0 0.0
        %1413 = vmatpush1.msra.mxu0 0.0
        %1414 = vmatprep.subr.mxu0 0.0
        %1415 = vmatpush1.msra.mxu0 0.0
        %1416 = vmatprep.subr.mxu0 0.0
        %1417 = vmatpush1.msra.mxu0 0.0
        %1418 = vmatprep.mubr.f32.mxu0 0.0
        %1419 = vmatmul.mubr.f32.gmra.mrb[0].mxu0 %v1352
        %v1420 = vpop.f32.mrb[0].mxu0
        %v1421 = vadd.f32 0.0, %v1420
        %v1422 = vpop.f32.mrb[0].mxu0
        %1423 = vdwg.mxu0
        %v1425 = vsel %vm987, %v1348, 0
        %1427 = vmatprep.subr.mxu0 0.0
        %1428 = vmatpush1.msra.mxu0 %v984
        %1429 = vmatprep.subr.mxu0 0.0
        %1430 = vmatpush1.msra.mxu0 0.0
        %1431 = vmatprep.subr.mxu0 0.0
        %1432 = vmatpush1.msra.mxu0 0.0
        %1433 = vmatprep.subr.mxu0 0.0
        %1434 = vmatpush1.msra.mxu0 0.0
        %1435 = vmatprep.subr.mxu0 0.0
        %1436 = vmatpush1.msra.mxu0 0.0
        %1437 = vmatprep.subr.mxu0 0.0
        %1438 = vmatpush1.msra.mxu0 0.0
        %1439 = vmatprep.subr.mxu0 0.0
        %1440 = vmatpush1.msra.mxu0 0.0
        %1441 = vmatprep.subr.mxu0 0.0
        %1442 = vmatpush1.msra.mxu0 0.0
        %1443 = vmatprep.subr.mxu0 0.0
        %1444 = vmatpush1.msra.mxu0 0.0
        %1445 = vmatprep.subr.mxu0 0.0
        %1446 = vmatpush1.msra.mxu0 0.0
        %1447 = vmatprep.subr.mxu0 0.0
        %1448 = vmatpush1.msra.mxu0 0.0
        %1449 = vmatprep.subr.mxu0 0.0
        %1450 = vmatpush1.msra.mxu0 0.0
        %1451 = vmatprep.subr.mxu0 0.0
        %1452 = vmatpush1.msra.mxu0 0.0
        %1453 = vmatprep.subr.mxu0 0.0
        %1454 = vmatpush1.msra.mxu0 0.0
        %1455 = vmatprep.subr.mxu0 0.0
        %1456 = vmatpush1.msra.mxu0 0.0
        %1457 = vmatprep.subr.mxu0 0.0
        %1458 = vmatpush1.msra.mxu0 0.0
        %1459 = vmatprep.subr.mxu0 0.0
        %1460 = vmatpush1.msra.mxu0 0.0
        %1461 = vmatprep.subr.mxu0 0.0
        %1462 = vmatpush1.msra.mxu0 0.0
        %1463 = vmatprep.subr.mxu0 0.0
        %1464 = vmatpush1.msra.mxu0 0.0
        %1465 = vmatprep.subr.mxu0 0.0
        %1466 = vmatpush1.msra.mxu0 0.0
        %1467 = vmatprep.subr.mxu0 0.0
        %1468 = vmatpush1.msra.mxu0 0.0
        %1469 = vmatprep.subr.mxu0 0.0
        %1470 = vmatpush1.msra.mxu0 0.0
        %1471 = vmatprep.subr.mxu0 0.0
        %1472 = vmatpush1.msra.mxu0 0.0
        %1473 = vmatprep.subr.mxu0 0.0
        %1474 = vmatpush1.msra.mxu0 0.0
        %1475 = vmatprep.subr.mxu0 0.0
        %1476 = vmatpush1.msra.mxu0 0.0
        %1477 = vmatprep.subr.mxu0 0.0
        %1478 = vmatpush1.msra.mxu0 0.0
        %1479 = vmatprep.subr.mxu0 0.0
        %1480 = vmatpush1.msra.mxu0 0.0
        %1481 = vmatprep.subr.mxu0 0.0
        %1482 = vmatpush1.msra.mxu0 0.0
        %1483 = vmatprep.subr.mxu0 0.0
        %1484 = vmatpush1.msra.mxu0 0.0
        %1485 = vmatprep.subr.mxu0 0.0
        %1486 = vmatpush1.msra.mxu0 0.0
        %1487 = vmatprep.subr.mxu0 0.0
        %1488 = vmatpush1.msra.mxu0 0.0
        %1489 = vmatprep.subr.mxu0 0.0
        %1490 = vmatpush1.msra.mxu0 0.0
        %1491 = vmatprep.mubr.f32.mxu0 0.0
        %1492 = vmatmul.mubr.f32.gmra.mrb[0].mxu0 %v1425
        %v1493 = vpop.f32.mrb[0].mxu0
        %v1494 = vadd.f32 0.0, %v1493
        %v1495 = vpop.f32.mrb[0].mxu0
        %1496 = vdwg.mxu0
        %v1498 = vsel %vm987, %v1349, 0
        %1500 = vmatprep.subr.mxu0 0.0
        %1501 = vmatpush1.msra.mxu0 %v985
        %1502 = vmatprep.subr.mxu0 0.0
        %1503 = vmatpush1.msra.mxu0 0.0
        %1504 = vmatprep.subr.mxu0 0.0
        %1505 = vmatpush1.msra.mxu0 0.0
        %1506 = vmatprep.subr.mxu0 0.0
        %1507 = vmatpush1.msra.mxu0 0.0
        %1508 = vmatprep.subr.mxu0 0.0
        %1509 = vmatpush1.msra.mxu0 0.0
        %1510 = vmatprep.subr.mxu0 0.0
        %1511 = vmatpush1.msra.mxu0 0.0
        %1512 = vmatprep.subr.mxu0 0.0
        %1513 = vmatpush1.msra.mxu0 0.0
        %1514 = vmatprep.subr.mxu0 0.0
        %1515 = vmatpush1.msra.mxu0 0.0
        %1516 = vmatprep.subr.mxu0 0.0
        %1517 = vmatpush1.msra.mxu0 0.0
        %1518 = vmatprep.subr.mxu0 0.0
        %1519 = vmatpush1.msra.mxu0 0.0
        %1520 = vmatprep.subr.mxu0 0.0
        %1521 = vmatpush1.msra.mxu0 0.0
        %1522 = vmatprep.subr.mxu0 0.0
        %1523 = vmatpush1.msra.mxu0 0.0
        %1524 = vmatprep.subr.mxu0 0.0
        %1525 = vmatpush1.msra.mxu0 0.0
        %1526 = vmatprep.subr.mxu0 0.0
        %1527 = vmatpush1.msra.mxu0 0.0
        %1528 = vmatprep.subr.mxu0 0.0
        %1529 = vmatpush1.msra.mxu0 0.0
        %1530 = vmatprep.subr.mxu0 0.0
        %1531 = vmatpush1.msra.mxu0 0.0
        %1532 = vmatprep.subr.mxu0 0.0
        %1533 = vmatpush1.msra.mxu0 0.0
        %1534 = vmatprep.subr.mxu0 0.0
        %1535 = vmatpush1.msra.mxu0 0.0
        %1536 = vmatprep.subr.mxu0 0.0
        %1537 = vmatpush1.msra.mxu0 0.0
        %1538 = vmatprep.subr.mxu0 0.0
        %1539 = vmatpush1.msra.mxu0 0.0
        %1540 = vmatprep.subr.mxu0 0.0
        %1541 = vmatpush1.msra.mxu0 0.0
        %1542 = vmatprep.subr.mxu0 0.0
        %1543 = vmatpush1.msra.mxu0 0.0
        %1544 = vmatprep.subr.mxu0 0.0
        %1545 = vmatpush1.msra.mxu0 0.0
        %1546 = vmatprep.subr.mxu0 0.0
        %1547 = vmatpush1.msra.mxu0 0.0
        %1548 = vmatprep.subr.mxu0 0.0
        %1549 = vmatpush1.msra.mxu0 0.0
        %1550 = vmatprep.subr.mxu0 0.0
        %1551 = vmatpush1.msra.mxu0 0.0
        %1552 = vmatprep.subr.mxu0 0.0
        %1553 = vmatpush1.msra.mxu0 0.0
        %1554 = vmatprep.subr.mxu0 0.0
        %1555 = vmatpush1.msra.mxu0 0.0
        %1556 = vmatprep.subr.mxu0 0.0
        %1557 = vmatpush1.msra.mxu0 0.0
        %1558 = vmatprep.subr.mxu0 0.0
        %1559 = vmatpush1.msra.mxu0 0.0
        %1560 = vmatprep.subr.mxu0 0.0
        %1561 = vmatpush1.msra.mxu0 0.0
        %1562 = vmatprep.subr.mxu0 0.0
        %1563 = vmatpush1.msra.mxu0 0.0
        %1564 = vmatprep.mubr.f32.mxu0 0.0
        %1565 = vmatmul.mubr.f32.gmra.mrb[0].mxu0 %v1498
        %v1566 = vpop.f32.mrb[0].mxu0
        %v1567 = vadd.f32 0.0, %v1566
        %v1568 = vpop.f32.mrb[0].mxu0
        %1569 = vdwg.mxu0
        %v1571 = vsel %vm987, %v1350, 0
        %1573 = vmatprep.subr.mxu0 0.0
        %1574 = vmatpush1.msra.mxu0 %v986
        %1575 = vmatprep.subr.mxu0 0.0
        %1576 = vmatpush1.msra.mxu0 0.0
        %1577 = vmatprep.subr.mxu0 0.0
        %1578 = vmatpush1.msra.mxu0 0.0
        %1579 = vmatprep.subr.mxu0 0.0
        %1580 = vmatpush1.msra.mxu0 0.0
        %1581 = vmatprep.subr.mxu0 0.0
        %1582 = vmatpush1.msra.mxu0 0.0
        %1583 = vmatprep.subr.mxu0 0.0
        %1584 = vmatpush1.msra.mxu0 0.0
        %1585 = vmatprep.subr.mxu0 0.0
        %1586 = vmatpush1.msra.mxu0 0.0
        %1587 = vmatprep.subr.mxu0 0.0
        %1588 = vmatpush1.msra.mxu0 0.0
        %1589 = vmatprep.subr.mxu0 0.0
        %1590 = vmatpush1.msra.mxu0 0.0
        %1591 = vmatprep.subr.mxu0 0.0
        %1592 = vmatpush1.msra.mxu0 0.0
        %1593 = vmatprep.subr.mxu0 0.0
        %1594 = vmatpush1.msra.mxu0 0.0
        %1595 = vmatprep.subr.mxu0 0.0
        %1596 = vmatpush1.msra.mxu0 0.0
        %1597 = vmatprep.subr.mxu0 0.0
        %1598 = vmatpush1.msra.mxu0 0.0
        %1599 = vmatprep.subr.mxu0 0.0
        %1600 = vmatpush1.msra.mxu0 0.0
        %1601 = vmatprep.subr.mxu0 0.0
        %1602 = vmatpush1.msra.mxu0 0.0
        %1603 = vmatprep.subr.mxu0 0.0
        %1604 = vmatpush1.msra.mxu0 0.0
        %1605 = vmatprep.subr.mxu0 0.0
        %1606 = vmatpush1.msra.mxu0 0.0
        %1607 = vmatprep.subr.mxu0 0.0
        %1608 = vmatpush1.msra.mxu0 0.0
        %1609 = vmatprep.subr.mxu0 0.0
        %1610 = vmatpush1.msra.mxu0 0.0
        %1611 = vmatprep.subr.mxu0 0.0
        %1612 = vmatpush1.msra.mxu0 0.0
        %1613 = vmatprep.subr.mxu0 0.0
        %1614 = vmatpush1.msra.mxu0 0.0
        %1615 = vmatprep.subr.mxu0 0.0
        %1616 = vmatpush1.msra.mxu0 0.0
        %1617 = vmatprep.subr.mxu0 0.0
        %1618 = vmatpush1.msra.mxu0 0.0
        %1619 = vmatprep.subr.mxu0 0.0
        %1620 = vmatpush1.msra.mxu0 0.0
        %1621 = vmatprep.subr.mxu0 0.0
        %1622 = vmatpush1.msra.mxu0 0.0
        %1623 = vmatprep.subr.mxu0 0.0
        %1624 = vmatpush1.msra.mxu0 0.0
        %1625 = vmatprep.subr.mxu0 0.0
        %1626 = vmatpush1.msra.mxu0 0.0
        %1627 = vmatprep.subr.mxu0 0.0
        %1628 = vmatpush1.msra.mxu0 0.0
        %1629 = vmatprep.subr.mxu0 0.0
        %1630 = vmatpush1.msra.mxu0 0.0
        %1631 = vmatprep.subr.mxu0 0.0
        %1632 = vmatpush1.msra.mxu0 0.0
        %1633 = vmatprep.subr.mxu0 0.0
        %1634 = vmatpush1.msra.mxu0 0.0
        %1635 = vmatprep.subr.mxu0 0.0
        %1636 = vmatpush1.msra.mxu0 0.0
        %1637 = vmatprep.mubr.f32.mxu0 0.0
        %1638 = vmatmul.mubr.f32.gmra.mrb[0].mxu0 %v1571
        %v1639 = vpop.f32.mrb[0].mxu0
        %v1640 = vadd.f32 0.0, %v1639
        %v1641 = vpop.f32.mrb[0].mxu0
        %1642 = vdwg.mxu0
        %v1643 = vcombine.low %v1421, %v1567
        %v1644 = vcombine.high %v1421, %v1567
        %v1646 = vunpack.c.l.s4 1983009808
        %v1647 = vunpack.c.0.s8 %v1646
        %v1648 = vlaneseq
        %v1649 = vshrl.u32 %v1648, 7
        %v1650 = vsub.s32 %v1647, %v1649
        %v1651 = vrot.slane %v1643, %v1650
        %v1653 = vunpack.c.l.s4 1983009808
        %v1654 = vunpack.c.0.s8 %v1653
        %v1655 = vlaneseq
        %v1656 = vshrl.u32 %v1655, 7
        %v1657 = vsub.s32 %v1654, %v1656
        %v1658 = vrot.slane %v1644, %v1657
        %v1659 = vcombine.low %v1494, %v1640
        %v1660 = vcombine.high %v1494, %v1640
        %v1662 = vunpack.c.l.s4 1983009808
        %v1663 = vunpack.c.0.s8 %v1662
        %v1664 = vlaneseq
        %v1665 = vshrl.u32 %v1664, 7
        %v1666 = vsub.s32 %v1663, %v1665
        %v1667 = vrot.slane %v1659, %v1666
        %v1669 = vunpack.c.l.s4 1983009808
        %v1670 = vunpack.c.0.s8 %v1669
        %v1671 = vlaneseq
        %v1672 = vshrl.u32 %v1671, 7
        %v1673 = vsub.s32 %v1670, %v1672
        %v1674 = vrot.slane %v1660, %v1673
        %v1675 = vcombine.low %v1651, %v1667
        %v1676 = vcombine.high %v1651, %v1667
        %v1678 = vunpack.c.l.s4 1934713408
        %v1679 = vunpack.c.0.s8 %v1678
        %v1680 = vlaneseq
        %v1681 = vshrl.u32 %v1680, 7
        %v1682 = vsub.s32 %v1679, %v1681
        %v1683 = vrot.slane %v1675, %v1682
        %v1685 = vunpack.c.l.s4 1934713408
        %v1686 = vunpack.c.0.s8 %v1685
        %v1687 = vlaneseq
        %v1688 = vshrl.u32 %v1687, 7
        %v1689 = vsub.s32 %v1686, %v1688
        %v1690 = vrot.slane %v1676, %v1689
        %v1691 = vcombine.low %v1658, %v1674
        %v1692 = vcombine.high %v1658, %v1674
        %v1694 = vunpack.c.l.s4 1934713408
        %v1695 = vunpack.c.0.s8 %v1694
        %v1696 = vlaneseq
        %v1697 = vshrl.u32 %v1696, 7
        %v1698 = vsub.s32 %v1695, %v1697
        %v1699 = vrot.slane %v1691, %v1698
        %v1701 = vunpack.c.l.s4 1934713408
        %v1702 = vunpack.c.0.s8 %v1701
        %v1703 = vlaneseq
        %v1704 = vshrl.u32 %v1703, 7
        %v1705 = vsub.s32 %v1702, %v1704
        %v1706 = vrot.slane %v1692, %v1705
        %v1707 = vcombine.high %v1683, 0.0
        %v1708 = vcombine.high %v1690, 0.0
        %v1709 = vcombine.high %v1699, 0.0
        %v1710 = vcombine.high %v1706, 0.0
        %v1711 = vcombine.low %v1683, %v1690
        %v1713 = vunpack.c.l.s4 1983009808
        %v1714 = vunpack.c.0.s8 %v1713
        %v1715 = vlaneseq
        %v1716 = vshrl.u32 %v1715, 7
        %v1717 = vsub.s32 %v1714, %v1716
        %v1718 = vrot.slane %v1711, %v1717
        %v1719 = vcombine.low %v1707, %v1708
        %v1721 = vunpack.c.l.s4 1983009808
        %v1722 = vunpack.c.0.s8 %v1721
        %v1723 = vlaneseq
        %v1724 = vshrl.u32 %v1723, 7
        %v1725 = vsub.s32 %v1722, %v1724
        %v1726 = vrot.slane %v1719, %v1725
        %v1727 = vcombine.low %v1699, %v1706
        %v1729 = vunpack.c.l.s4 1983009808
        %v1730 = vunpack.c.0.s8 %v1729
        %v1731 = vlaneseq
        %v1732 = vshrl.u32 %v1731, 7
        %v1733 = vsub.s32 %v1730, %v1732
        %v1734 = vrot.slane %v1727, %v1733
        %v1735 = vcombine.low %v1709, %v1710
        %v1737 = vunpack.c.l.s4 1983009808
        %v1738 = vunpack.c.0.s8 %v1737
        %v1739 = vlaneseq
        %v1740 = vshrl.u32 %v1739, 7
        %v1741 = vsub.s32 %v1738, %v1740
        %v1742 = vrot.slane %v1735, %v1741
        %v1743 = vcombine.low %v1718, %v1726
        %v1744 = vcombine.high %v1718, %v1726
        %v1746 = vunpack.c.l.s4 1934713408
        %v1747 = vunpack.c.0.s8 %v1746
        %v1748 = vlaneseq
        %v1749 = vshrl.u32 %v1748, 7
        %v1750 = vsub.s32 %v1747, %v1749
        %v1751 = vrot.slane %v1743, %v1750
        %v1753 = vunpack.c.l.s4 1934713408
        %v1754 = vunpack.c.0.s8 %v1753
        %v1755 = vlaneseq
        %v1756 = vshrl.u32 %v1755, 7
        %v1757 = vsub.s32 %v1754, %v1756
        %v1758 = vrot.slane %v1744, %v1757
        %v1759 = vcombine.low %v1734, %v1742
        %v1760 = vcombine.high %v1734, %v1742
        %v1762 = vunpack.c.l.s4 1934713408
        %v1763 = vunpack.c.0.s8 %v1762
        %v1764 = vlaneseq
        %v1765 = vshrl.u32 %v1764, 7
        %v1766 = vsub.s32 %v1763, %v1765
        %v1767 = vrot.slane %v1759, %v1766
        %v1769 = vunpack.c.l.s4 1934713408
        %v1770 = vunpack.c.0.s8 %v1769
        %v1771 = vlaneseq
        %v1772 = vshrl.u32 %v1771, 7
        %v1773 = vsub.s32 %v1770, %v1772
        %v1774 = vrot.slane %v1760, %v1773
        %v1775 = vcombine.low %v1751, %v1767
        %v1776 = vcombine.high %v1751, %v1767
        %v1777 = vcombine.low %v1758, %v1774
        %v1778 = vcombine.high %v1758, %v1774
        %1780 = vrot.lane.b32.xlu0 %v1776, 8
        %v1781 = vpop.permute.xlu0 %1780
        %1784 = vrot.lane.b32.xlu0 %v1777, 16
        %v1785 = vpop.permute.xlu0 %1784
        %1788 = vrot.lane.b32.xlu0 %v1778, 24
        %v1789 = vpop.permute.xlu0 %1788
        %v1791 = vsel %vm987, %v1775, %v1781
        %vm1792 = vcmask 130048
        %v1793 = vsel %vm1792, %v1791, %v1785
        %vm1794 = vcmask 195584
        %v1795 = vsel %vm1794, %v1793, %v1789
        %v1796 = vld [vmem:[#allocation10] sm:$0xff]
        %v1797 = vld [vmem:[#allocation10 + $0x8] sm:$0xff]
        %v1798 = vld [vmem:[#allocation10 + $0x10] sm:$0xff]
        %v1799 = vld [vmem:[#allocation10 + $0x18] sm:$0xff]
        %v1800 = vld [vmem:[#allocation11] sm:$0x1]
        %v1802 = vlaneseq
        %v1803 = vshrl.u32 %v1802, 7
        %v1804 = vsub.s32 0, %v1803
        %v1805 = vrot.slane %v1800, %v1804
        %v1808 = vsel %vm471, %v1795, 0
        %1810 = vmatprep.subr.mxu0 0.0
        %1811 = vmatpush1.msra.mxu0 %v1796
        %1812 = vmatprep.subr.mxu0 0.0
        %1813 = vmatpush1.msra.mxu0 %v1797
        %1814 = vmatprep.subr.mxu0 0.0
        %1815 = vmatpush1.msra.mxu0 %v1798
        %1816 = vmatprep.subr.mxu0 0.0
        %1817 = vmatpush1.msra.mxu0 %v1799
        %1818 = vmatprep.subr.mxu0 0.0
        %1819 = vmatpush1.msra.mxu0 0.0
        %1820 = vmatprep.subr.mxu0 0.0
        %1821 = vmatpush1.msra.mxu0 0.0
        %1822 = vmatprep.subr.mxu0 0.0
        %1823 = vmatpush1.msra.mxu0 0.0
        %1824 = vmatprep.subr.mxu0 0.0
        %1825 = vmatpush1.msra.mxu0 0.0
        %1826 = vmatprep.subr.mxu0 0.0
        %1827 = vmatpush1.msra.mxu0 0.0
        %1828 = vmatprep.subr.mxu0 0.0
        %1829 = vmatpush1.msra.mxu0 0.0
        %1830 = vmatprep.subr.mxu0 0.0
        %1831 = vmatpush1.msra.mxu0 0.0
        %1832 = vmatprep.subr.mxu0 0.0
        %1833 = vmatpush1.msra.mxu0 0.0
        %1834 = vmatprep.subr.mxu0 0.0
        %1835 = vmatpush1.msra.mxu0 0.0
        %1836 = vmatprep.subr.mxu0 0.0
        %1837 = vmatpush1.msra.mxu0 0.0
        %1838 = vmatprep.subr.mxu0 0.0
        %1839 = vmatpush1.msra.mxu0 0.0
        %1840 = vmatprep.subr.mxu0 0.0
        %1841 = vmatpush1.msra.mxu0 0.0
        %1842 = vmatprep.subr.mxu0 0.0
        %1843 = vmatpush1.msra.mxu0 0.0
        %1844 = vmatprep.subr.mxu0 0.0
        %1845 = vmatpush1.msra.mxu0 0.0
        %1846 = vmatprep.subr.mxu0 0.0
        %1847 = vmatpush1.msra.mxu0 0.0
        %1848 = vmatprep.subr.mxu0 0.0
        %1849 = vmatpush1.msra.mxu0 0.0
        %1850 = vmatprep.subr.mxu0 0.0
        %1851 = vmatpush1.msra.mxu0 0.0
        %1852 = vmatprep.subr.mxu0 0.0
        %1853 = vmatpush1.msra.mxu0 0.0
        %1854 = vmatprep.subr.mxu0 0.0
        %1855 = vmatpush1.msra.mxu0 0.0
        %1856 = vmatprep.subr.mxu0 0.0
        %1857 = vmatpush1.msra.mxu0 0.0
        %1858 = vmatprep.subr.mxu0 0.0
        %1859 = vmatpush1.msra.mxu0 0.0
        %1860 = vmatprep.subr.mxu0 0.0
        %1861 = vmatpush1.msra.mxu0 0.0
        %1862 = vmatprep.subr.mxu0 0.0
        %1863 = vmatpush1.msra.mxu0 0.0
        %1864 = vmatprep.subr.mxu0 0.0
        %1865 = vmatpush1.msra.mxu0 0.0
        %1866 = vmatprep.subr.mxu0 0.0
        %1867 = vmatpush1.msra.mxu0 0.0
        %1868 = vmatprep.subr.mxu0 0.0
        %1869 = vmatpush1.msra.mxu0 0.0
        %1870 = vmatprep.subr.mxu0 0.0
        %1871 = vmatpush1.msra.mxu0 0.0
        %1872 = vmatprep.subr.mxu0 0.0
        %1873 = vmatpush1.msra.mxu0 0.0
        %1874 = vmatprep.mubr.f32.mxu0 0.0
        %1875 = vmatmul.mubr.f32.gmra.mrb[0].mxu0 %v1808
        %v1876 = vpop.f32.mrb[0].mxu0
        %v1877 = vadd.f32 %v1805, %v1876
        %v1878 = vpop.f32.mrb[0].mxu0
        %1879 = vdwg.mxu0
        %v1880 = vadd.f32 %v1877, %v459
        %v1881 = vsel %vm471, %v1880, 0.0
        %1882 = vadd.xlane.f32.xlu0 %v1881
        %v1883 = vpop.xlane.xlu0 %1882
        %v1884 = vrcp.pop 32.0
        %v1885 = vmul.f32 %v1883, %v1884
        %v1886 = vsub.f32 %v1880, %v1885
        %v1887 = vmul.f32 %v1886, %v1886
        %v1888 = vsel %vm471, %v1887, 0.0
        %1889 = vadd.xlane.f32.xlu0 %v1888
        %v1890 = vpop.xlane.xlu0 %1889
        %v1891 = vmul.f32 %v1890, %v1884
        %v1892 = vadd.f32 %v1891, 1e-12
        %v1893 = vrsqrt.pop %v1892
        %v1894 = vmul.f32 %v1886, %v1893
        %v1895 = vld [vmem:[#allocation13] sm:$0x1]
        %v1897 = vlaneseq
        %v1898 = vshrl.u32 %v1897, 7
        %v1899 = vsub.s32 0, %v1898
        %v1900 = vrot.slane %v1895, %v1899
        %v1902 = vmul.f32 %v1894, %v1900
        %v1903 = vld [vmem:[#allocation14] sm:$0x1]
        %v1905 = vlaneseq
        %v1906 = vshrl.u32 %v1905, 7
        %v1907 = vsub.s32 0, %v1906
        %v1908 = vrot.slane %v1903, %v1907
        %v1910 = vadd.f32 %v1902, %v1908
        %1911 = vst.msk [vmem:[%s456] sm:$0xff] %vm471, %v1910
        %s1912 = sand.u32 %s235, 1
        %s1913 = scalar_lea.sflag [#allocation4], %s1912
        %s1914 = sand.u32 %s235, 1
        %s1915 = smul.addr %s1914, 8
        %s1916 = scalar_lea.vmem [#allocation16], %s1915
        // Predicated region
        $region85: #{tpu_custom_call.1} parent=51 // pred_check
          %p1917 = pneg %p245
        $region86: #{tpu_custom_call.1} parent=51 // pred_check_branch
          %1919 = sbr.rel (%p1917) target = $region88
        $region87: #{tpu_custom_call.1} parent=51 // pred_region
          %s1921 = ssub.s32 128, 128
          %1922 = vsyncadd %s1913, %s1921
          %s1923 = sadd.s32 %s36, %s35
          %s1924 = smul.addr %s1923, 128
          %s1925 = scalar_lea.hbm %s8, %s1924
          %s1927 = sshll.u32 %s1916, 4
          %s1928 = int_to_ptr.vmem [resolvable:$true] %s1927
          %1930 = dma.vmem_to_hbm [thread:$0]  %s1928, 128, %s1925, %s1913
        $region88: #{tpu_custom_call.1} parent=51 // pred_fallthru
          _
      $region52: #{tpu_custom_call.1} parent=5 // pred_fallthru
        _
      %p1931 = scmp.le.s32.totalorder 2, %s26
      // Predicated region
      $region89: #{tpu_custom_call.1} parent=5 // pred_check
        %p1932 = pneg %p1931
      $region90: #{tpu_custom_call.1} parent=5 // pred_check_branch
        %1934 = sbr.rel (%p1932) target = $region92
      $region91: #{tpu_custom_call.1} parent=5 // pred_region
        %s1935 = ssub.s32 %s26, 2
        // Predicated region
        $region93: #{tpu_custom_call.1} parent=91 // pred_check
          %p1936 = pneg %p251
        $region94: #{tpu_custom_call.1} parent=91 // pred_check_branch
          %1938 = sbr.rel (%p1936) target = $region96
        $region95: #{tpu_custom_call.1} parent=91 // pred_region
          %s1939 = sand.u32 %s236, 1
          %s1940 = scalar_lea.sflag [#allocation4], %s1939
          %s1941 = sand.u32 %s236, 1
          %s1942 = smul.addr %s1941, 8
          %s1943 = scalar_lea.vmem [#allocation16], %s1942
          %1944 = dma.done %s1940, 128
        $region96: #{tpu_custom_call.1} parent=91 // pred_fallthru
          _
      $region92: #{tpu_custom_call.1} parent=5 // pred_fallthru
        _
    $region6: #{tpu_custom_call.1} parent=1 // loop_footer
      %s30 = sadd.s32 1, %s26
    $region7: #{tpu_custom_call.1} parent=1 // loop_footer_branch
      %25 = sbr.rel target = $region3
    $region8: #{tpu_custom_call.1} parent=1 // loop_exit
      _
    %1945 = vsyncpa [#allocation3], 1
    %s1946 = scalar_lea.sflag [#allocation3], 1
    %1947 = vsyncpa %s1946, 1
    %1948 = vsyncpa [#allocation6], 1
    %1949 = vsyncpa [#allocation9], 1
    %s1950 = scalar_lea.sflag [#allocation9], 1
    %1951 = vsyncpa %s1950, 1
    %1952 = vsyncpa [#allocation12], 1
    %1953 = vsyncpa [#allocation15], 1
    %1954 = vsyncpa [#allocation4], 1
    %s1955 = scalar_lea.sflag [#allocation4], 1
    %1956 = vsyncpa %s1955, 1

</llo_original>
